<compile_context>
chip_gen: v6e
topology: v6e:2x2x1
jax: 0.10.0
libtpu: 0.0.40
codegen_flags: <defaults>
</compile_context>

<pallas_src>
import math
from functools import partial

import jax
import jax.numpy as jnp
from jax import lax
from jax.experimental import pallas as pl
from jax.experimental.pallas import tpu as pltpu

_LANE = 128
_SUBLANE = 8


def _round_up(x, m):
    return ((x + m - 1) // m) * m


def _cdiv(a, b):
    return -(-a // b)


def _hw_config():
    """Generation-aware knobs: (max_frame_tile, min_tiles, vmem_limit)."""
    vmem = None
    try:
        vmem = int(pltpu.get_tpu_info().vmem_capacity_bytes)
    except Exception:  # noqa: BLE001 - fall back to conservative settings
        vmem = None
    if vmem is not None and vmem >= 96 * 1024 * 1024:
        # v5e / v6e: single TensorCore, 128 MiB VMEM -> fewer, larger tiles.
        return 512, 1, 100 * 1024 * 1024
    # v7x (64 MiB VMEM, 2 TensorCores) or unknown: conservative settings.
    return 256, 2, 48 * 1024 * 1024


def _choose_frame_tile(n_frames, r_chunks, max_tile, min_tiles):
    """Frame tile tf (multiple of tq), padded frame count, and tail size tq."""
    tq = _round_up(max(r_chunks - 1, 1), _SUBLANE)
    n_tiles = max(min_tiles, _cdiv(n_frames, max_tile))
    tf = min(_round_up(n_frames, tq),
             _round_up(_cdiv(n_frames, n_tiles), tq))
    tf = max(tf, tq)
    f_pad = _round_up(n_frames, tf)
    return tf, f_pad, tq


# ----------------------------------------------------------------------------
# Parameter / constant construction (deterministic, in-script)
# ----------------------------------------------------------------------------
def build_window(n_fft, window_fn="hann"):
    if window_fn != "hann":
        raise ValueError("only 'hann' supported in this synthetic kernel")
    n = jnp.arange(n_fft, dtype=jnp.float32)
    # periodic hann, matching torch.hann_window(n_fft)
    return 0.5 * (1.0 - jnp.cos(2.0 * math.pi * n / n_fft))


def build_dft_matrices(n_fft, window, compute_dtype):
    """Window-folded, lane-padded real-DFT matrices.

    csyn : (2*Kp, N)  inverse rDFT, rows [0:Kp]=Re part, [Kp:2Kp]=Im part,
                      columns pre-multiplied by the synthesis window.
    bmat : (N, 2*Kp)  forward windowed rDFT, columns [Re | Im].
    Kp = round_up(N//2 + 1, 128).
    """
    n_bins = n_fft // 2 + 1
    kp = _round_up(n_bins, _LANE)
    k = jnp.arange(n_bins, dtype=jnp.float32)[:, None]          # (K, 1)
    n = jnp.arange(n_fft, dtype=jnp.float32)[None, :]           # (1, N)
    ang = 2.0 * math.pi * k * n / n_fft                         # (K, N)
    w = jnp.where((k == 0) | (k == n_fft // 2), 1.0, 2.0)       # hermitian wt
    creal = (w / n_fft) * jnp.cos(ang)                          # irfft real
    cimag = -(w / n_fft) * jnp.sin(ang)                         # irfft imag
    kpad = ((0, kp - n_bins), (0, 0))
    csyn = jnp.concatenate([jnp.pad(creal, kpad), jnp.pad(cimag, kpad)],
                           axis=0) * window[None, :]            # (2Kp, N)
    bcos = jnp.cos(ang).T * window[:, None]                     # (N, K)
    bsin = -jnp.sin(ang).T * window[:, None]                    # (N, K)
    kpad_t = ((0, 0), (0, kp - n_bins))
    bmat = jnp.concatenate([jnp.pad(bcos, kpad_t), jnp.pad(bsin, kpad_t)],
                           axis=1)                              # (N, 2Kp)
    return csyn.astype(compute_dtype), bmat.astype(compute_dtype)


# ----------------------------------------------------------------------------
# Pallas kernels
# ----------------------------------------------------------------------------
def _synth_kernel(amp_ref, s2_ref, c_ref, out_ref, xri_ref,
                  *, kp, hop, r_chunks, tf, tq, cdt):
    """amp*exp(i*angle(S)) -> windowed irDFT frames -> in-tile overlap-add.

    Output is this tile's partial chunk stream (tf + tq, hop); the (R-1)-row
    seams between neighbouring tiles are stitched with one XLA add outside.
    Phase math stays f32; matmuls use `cdt` operands with f32 accumulation.
    """
    amp = amp_ref[...].astype(jnp.float32)         # (TF, Kp)
    s2 = s2_ref[...]                               # (TF, 2Kp) f32 [Re | Im]
    sr = s2[:, :kp]
    si = s2[:, kp:]
    mag2 = sr * sr + si * si
    nz = mag2 > 0.0
    inv = lax.rsqrt(jnp.where(nz, mag2, 1.0))
    cosp = jnp.where(nz, sr * inv, 1.0)            # torch.angle(0) == 0
    sinp = jnp.where(nz, si * inv, 0.0)
    # write the two halves straight into the (TF, 2Kp) scratch (no lane concat)
    xri_ref[:, :kp] = (amp * cosp).astype(cdt)
    xri_ref[:, kp:] = (amp * sinp).astype(cdt)
    xri = xri_ref[...]
    # in-kernel overlap-add: chunk (f + r) += frame f, hop-group r
    out_ref[pl.ds(tf, tq), :] = jnp.zeros((tq, hop), jnp.float32)
    out_ref[pl.ds(0, tf), :] = jnp.dot(xri, c_ref[:, :hop],
                                       preferred_element_type=jnp.float32)
    for r in range(1, r_chunks):
        out_ref[pl.ds(r, tf), :] += jnp.dot(
            xri, c_ref[:, r * hop:(r + 1) * hop],
            preferred_element_type=jnp.float32)


def _analysis_kernel(body_ref, next_ref, b_ref, s2_ref, slab_ref, frame_ref,
                     *, tf, tq, hop, r_chunks, cdt):
    """Windowed forward rDFT of hop-strided frames, one frame tile.

    The hop-chunked signal arrives through two auto-pipelined BlockSpec views
    (this tile's chunks plus the first tq chunks of the next tile), so the
    (C, F, n_fft) framed tensor never exists in HBM and no manual DMA is
    needed.  The frame tile is materialized once in a `cdt` scratch and the
    whole contraction is a single long-K MXU matmul.
    """
    slab_ref[pl.ds(0, tf), :] = body_ref[...]
    slab_ref[pl.ds(tf, tq), :] = next_ref[...]
    for r in range(r_chunks):
        frame_ref[:, r * hop:(r + 1) * hop] = (
            slab_ref[pl.ds(r, tf), :].astype(cdt))
    s2_ref[...] = jnp.dot(frame_ref[...], b_ref[...],
                          preferred_element_type=jnp.float32)


def _const_spec(shape, index_map):
    # grid-invariant operand: single-buffer it (double-buffering a constant
    # block only doubles its VMEM footprint; matters for large n_fft on v7x).
    try:
        return pl.BlockSpec(shape, index_map, pipeline_mode=pl.Buffered(1))
    except Exception:  # pragma: no cover - older jax without Buffered
        return pl.BlockSpec(shape, index_map)


def _synth(amp_p, s2, csyn, *, tf, tq, hop, r_chunks, vmem_limit):
    C, f_pad, kp = amp_p.shape
    kp2, n_fft = csyn.shape
    nt = f_pad // tf
    n_slab = tf + tq
    kern = partial(_synth_kernel, kp=kp, hop=hop, r_chunks=r_chunks,
                   tf=tf, tq=tq, cdt=csyn.dtype)
    flops = 2 * C * f_pad * kp2 * n_fft
    bytes_acc = (amp_p.size * amp_p.dtype.itemsize + s2.size * 4 +
                 csyn.size * csyn.dtype.itemsize + C * nt * n_slab * hop * 4)
    return pl.pallas_call(
        kern,
        out_shape=jax.ShapeDtypeStruct((C, nt, n_slab, hop), jnp.float32),
        grid=(C, nt),
        in_specs=[
            pl.BlockSpec((None, tf, kp), lambda c, j: (c, j, 0)),
            pl.BlockSpec((None, tf, kp2), lambda c, j: (c, j, 0)),
            _const_spec((kp2, n_fft), lambda c, j: (0, 0)),
        ],
        out_specs=pl.BlockSpec((None, None, n_slab, hop),
                               lambda c, j: (c, j, 0, 0)),
        scratch_shapes=[pltpu.VMEM((tf, kp2), csyn.dtype)],
        compiler_params=pltpu.CompilerParams(
            dimension_semantics=("parallel", "parallel"),
            vmem_limit_bytes=vmem_limit),
        cost_estimate=pl.CostEstimate(flops=flops,
                                      transcendentals=C * f_pad * kp,
                                      bytes_accessed=bytes_acc),
    )(amp_p, s2, csyn)


def _analysis(chunks, bmat, *, tf, tq, hop, r_chunks, f_pad, vmem_limit):
    C = chunks.shape[0]
    n_fft, kp2 = bmat.shape
    nt = f_pad // tf
    blocks_per_tile = tf // tq
    kern = partial(_analysis_kernel, tf=tf, tq=tq, hop=hop,
                   r_chunks=r_chunks, cdt=bmat.dtype)
    flops = 2 * C * f_pad * n_fft * kp2
    bytes_acc = (chunks.size * 4 + bmat.size * bmat.dtype.itemsize +
                 C * f_pad * kp2 * 4)
    return pl.pallas_call(
        kern,
        out_shape=jax.ShapeDtypeStruct((C, f_pad, kp2), jnp.float32),
        grid=(C, nt),
        in_specs=[
            pl.BlockSpec((None, tf, hop), lambda c, j: (c, j, 0)),
            pl.BlockSpec((None, tq, hop),
                         lambda c, j: (c, (j + 1) * blocks_per_tile, 0)),
            _const_spec((n_fft, kp2), lambda c, j: (0, 0)),
        ],
        out_specs=pl.BlockSpec((None, tf, kp2), lambda c, j: (c, j, 0)),
        scratch_shapes=[pltpu.VMEM((tf + tq, hop), jnp.float32),
                        pltpu.VMEM((tf, n_fft), bmat.dtype)],
        compiler_params=pltpu.CompilerParams(
            dimension_semantics=("parallel", "parallel"),
            vmem_limit_bytes=vmem_limit),
        cost_estimate=pl.CostEstimate(flops=flops, transcendentals=0,
                                      bytes_accessed=bytes_acc),
    )(chunks, chunks, bmat)


# ----------------------------------------------------------------------------
# Full Griffin-Lim loop
# ----------------------------------------------------------------------------
@partial(jax.jit, static_argnames=("hop", "iteration", "max_tile",
                                   "min_tiles", "vmem_limit"))
def _griffin_lim_loop(amp, phase0, csyn, bmat, window, hop, iteration,
                      max_tile, min_tiles, vmem_limit):
    # amp / phase0: (C, n_bins, n_frames) in the PyTorch layout.
    C, K, F = amp.shape
    kp2, n_fft = csyn.shape
    kp = kp2 // 2
    R = n_fft // hop
    pad = n_fft // 2
    l_out = (F - 1) * hop                         # torch.istft(center=True)

    tf, f_pad, tq = _choose_frame_tile(F, R, max_tile, min_tiles)
    m_pad_r = f_pad + tf                          # chunk rows / channel (tile aligned)
    cdt = csyn.dtype

    amp_t = jnp.transpose(amp, (0, 2, 1)).astype(jnp.float32)     # (C, F, K)
    phase_t = jnp.transpose(phase0, (0, 2, 1)).astype(jnp.float32)
    pads = ((0, 0), (0, f_pad - F), (0, kp - K))
    amp_p = jnp.pad(amp_t, pads).astype(cdt)                      # (C, Fp, Kp) bf16
    s2 = jnp.concatenate([jnp.pad(jnp.cos(phase_t), pads),
                          jnp.pad(jnp.sin(phase_t), pads)],
                         axis=-1)                                 # (C, Fp, 2Kp)

    # iteration-invariant squared-window OLA envelope (guarded reciprocal)
    w2 = (window * window).reshape(R, hop)
    env_chunks = sum(
        jnp.pad(jnp.broadcast_to(w2[r], (F, hop)), ((r, R - 1 - r), (0, 0)))
        for r in range(R))                                        # (F+R-1, hop)
    env = env_chunks.reshape(-1)[pad:pad + l_out]
    inv_env = 1.0 / jnp.where(env > 1e-11, env, 1.0)              # COLA (hann)

    def body(_, s2):
        # synthesis + in-kernel overlap-add -> per-tile partial chunk streams
        part = _synth(amp_p, s2, csyn, tf=tf, tq=tq, hop=hop, r_chunks=R,
                      vmem_limit=vmem_limit)                      # (C,nt,tf+tq,hop)
        nt = f_pad // tf
        # stitch the (R-1)-row seams between neighbouring frame tiles
        body_c = part[:, :, :tf, :].reshape(C, f_pad, hop)
        tail = part[:, :, tf:tf + R - 1, :]                       # (C, nt, R-1, hop)
        tail_c = jnp.pad(tail, ((0, 0), (0, 0), (0, tf - (R - 1)), (0, 0)))
        tail_c = jnp.pad(tail_c.reshape(C, nt * tf, hop),
                         ((0, 0), (tf, 0), (0, 0)))[:, :f_pad + R - 1, :]
        sig_chunks = jnp.pad(body_c, ((0, 0), (0, R - 1), (0, 0))) + tail_c
        # envelope normalise, trim to istft length, reflect pad for the stft
        sig = sig_chunks.reshape(C, -1)[:, pad:pad + l_out] * inv_env[None, :]
        padded = jnp.pad(sig, ((0, 0), (pad, pad)), mode="reflect")
        padded = jnp.pad(padded, ((0, 0), (0, m_pad_r * hop - padded.shape[1])))
        chunks = padded.reshape(C, m_pad_r, hop)
        # analysis: windowed STFT straight from the hop-chunked signal
        return _analysis(chunks, bmat, tf=tf, tq=tq, hop=hop, r_chunks=R,
                         f_pad=f_pad, vmem_limit=vmem_limit)

    s2 = lax.fori_loop(0, iteration, body, s2)
    # final torch.angle == arctan2, trimming the bin / frame padding once.
    phase = jnp.arctan2(s2[:, :F, kp:kp + K], s2[:, :F, :K])      # (C, F, K)
    return jnp.transpose(phase, (0, 2, 1))                        # (C, K, F)


class GriffinLim:
    """JAX/Pallas port of the PyTorch GriffinLim module's forward pass."""

    def __init__(self, fft_size, hop_size=None, window_fn="hann",
                 compute_dtype=jnp.bfloat16):
        if hop_size is None:
            hop_size = fft_size // 4
        if fft_size % hop_size != 0:
            # TODO(synk): reshape-based OLA / in-kernel framing assume
            # hop_size | fft_size (true for the module default fft_size//4).
            raise ValueError("hop_size must divide fft_size in this port")
        self.fft_size = fft_size
        self.hop_size = hop_size
        # compute_dtype=jnp.float32 is the validated high-precision fallback.
        self.window = build_window(fft_size, window_fn)
        self.csyn, self.bmat = build_dft_matrices(fft_size, self.window,
                                                  compute_dtype)
        self.max_tile, self.min_tiles, self.vmem_limit = _hw_config()

    def __call__(self, amplitude, phase=None, iteration=10, key=None):
        n_dims = amplitude.ndim
        if n_dims == 2:
            channels = None
            amp = amplitude[None]
        elif n_dims > 2:
            channels = amplitude.shape[:-2]
            amp = amplitude.reshape(-1, *amplitude.shape[-2:])
        else:
            raise ValueError("Invalid shape of tensor.")
        if phase is None:
            if key is None:
                key = jax.random.PRNGKey(0)
            phase = jax.random.uniform(key, amp.shape, jnp.float32,
                                       0.0, 2.0 * math.pi)
        else:
            phase = jnp.asarray(phase, jnp.float32).reshape(amp.shape)
        out = _griffin_lim_loop(
            jnp.asarray(amp, jnp.float32), phase, self.csyn, self.bmat,
            self.window, hop=self.hop_size, iteration=iteration,
            max_tile=self.max_tile, min_tiles=self.min_tiles,
            vmem_limit=self.vmem_limit)
        if n_dims == 2:
            return out[0]
        return out.reshape(*channels, *out.shape[-2:])


if __name__ == "__main__":
    key = jax.random.PRNGKey(0)
    k_amp, k_phase = jax.random.split(key)

    fft_size = 16
    hop_size = 4
    n_bins = fft_size // 2 + 1        # 9
    n_frames = 8
    in_channels = 2

    amplitude = jax.random.uniform(k_amp, (in_channels, n_bins, n_frames),
                                   jnp.float32, 0.0, 1.0)

    gl = GriffinLim(fft_size, hop_size)
    phase = gl(amplitude, iteration=10, key=k_phase)
    phase = jax.block_until_ready(phase)

    assert phase.shape == amplitude.shape, phase.shape
    assert phase.dtype == jnp.float32
    assert bool(jnp.all(jnp.isfinite(phase)))
    assert bool(jnp.all(jnp.abs(phase) <= math.pi + 1e-5))
    print("KERNEL_OK")
</pallas_src>

<mosaic_0001>
module attributes {stable_mosaic.version = 11 : i64} {
  func.func @_synth_kernel(%arg0: i32, %arg1: i32, %arg2: memref<1x8x128xbf16, #tpu.memory_space<vmem>>, %arg3: memref<1x8x256xf32, #tpu.memory_space<vmem>>, %arg4: memref<256x16xbf16, #tpu.memory_space<vmem>>, %arg5: memref<1x1x16x4xf32, #tpu.memory_space<vmem>>, %arg6: memref<8x256xbf16, #tpu.memory_space<vmem>>) attributes {dimension_semantics = [#tpu.dimension_semantics<parallel>, #tpu.dimension_semantics<parallel>], iteration_bounds = array<i64: 2, 1>, scalar_prefetch = 0 : i64, scratch_operands = 1 : i64, tpu.core_type = #tpu.core_type<tc>, window_params = [{transform_indices = @transform_0, window_bounds = array<i64: 1, 8, 128>}, {transform_indices = @transform_1, window_bounds = array<i64: 1, 8, 256>}, {pipeline_mode = #tpu.pipeline_mode<synchronous>, transform_indices = @transform_2, window_bounds = array<i64: 256, 16>}, {transform_indices = @transform_3, window_bounds = array<i64: 1, 1, 16, 4>}]} {
    %c0 = arith.constant 0 : index
    %c0_0 = arith.constant 0 : index
    %c0_1 = arith.constant 0 : index
    %0 = vector.load %arg2[%c0, %c0_0, %c0_1] : memref<1x8x128xbf16, #tpu.memory_space<vmem>>, vector<1x8x128xbf16>
    %1 = vector.shape_cast %0 : vector<1x8x128xbf16> to vector<8x128xbf16>
    %2 = arith.extf %1 : vector<8x128xbf16> to vector<8x128xf32>
    %c0_2 = arith.constant 0 : index
    %c0_3 = arith.constant 0 : index
    %c0_4 = arith.constant 0 : index
    %3 = vector.load %arg3[%c0_2, %c0_3, %c0_4] : memref<1x8x256xf32, #tpu.memory_space<vmem>>, vector<1x8x256xf32>
    %4 = vector.shape_cast %3 : vector<1x8x256xf32> to vector<8x256xf32>
    %5 = vector.extract_strided_slice %4 {offsets = [0, 0], sizes = [8, 128], strides = [1, 1]} : vector<8x256xf32> to vector<8x128xf32>
    %6 = vector.extract_strided_slice %4 {offsets = [0, 128], sizes = [8, 128], strides = [1, 1]} : vector<8x256xf32> to vector<8x128xf32>
    %7 = arith.mulf %5, %5 : vector<8x128xf32>
    %8 = arith.mulf %6, %6 : vector<8x128xf32>
    %9 = arith.addf %7, %8 : vector<8x128xf32>
    %cst = arith.constant 0.000000e+00 : f32
    %10 = vector.broadcast %cst : f32 to vector<8x128xf32>
    %11 = arith.cmpf ogt, %9, %10 : vector<8x128xf32>
    %cst_5 = arith.constant 1.000000e+00 : f32
    %12 = vector.broadcast %cst_5 : f32 to vector<8x128xf32>
    %13 = arith.select %11, %9, %12 : vector<8x128xi1>, vector<8x128xf32>
    %14 = math.rsqrt %13 : vector<8x128xf32>
    %15 = arith.mulf %5, %14 : vector<8x128xf32>
    %cst_6 = arith.constant 1.000000e+00 : f32
    %16 = vector.broadcast %cst_6 : f32 to vector<8x128xf32>
    %17 = arith.select %11, %15, %16 : vector<8x128xi1>, vector<8x128xf32>
    %18 = arith.mulf %6, %14 : vector<8x128xf32>
    %cst_7 = arith.constant 0.000000e+00 : f32
    %19 = vector.broadcast %cst_7 : f32 to vector<8x128xf32>
    %20 = arith.select %11, %18, %19 : vector<8x128xi1>, vector<8x128xf32>
    %21 = arith.mulf %2, %17 : vector<8x128xf32>
    %22 = arith.truncf %21 : vector<8x128xf32> to vector<8x128xbf16>
    %c0_8 = arith.constant 0 : index
    %c0_9 = arith.constant 0 : index
    %23 = vector.load %arg6[%c0_8, %c0_9] : memref<8x256xbf16, #tpu.memory_space<vmem>>, vector<8x128xbf16>
    tpu.vector_store %arg6[%c0_8, %c0_9], %22 {strides = array<i32>} : memref<8x256xbf16, #tpu.memory_space<vmem>>, vector<8x128xbf16>,
    %24 = arith.mulf %2, %20 : vector<8x128xf32>
    %25 = arith.truncf %24 : vector<8x128xf32> to vector<8x128xbf16>
    %c0_10 = arith.constant 0 : index
    %c128 = arith.constant 128 : index
    %26 = vector.load %arg6[%c0_10, %c128] : memref<8x256xbf16, #tpu.memory_space<vmem>>, vector<8x128xbf16>
    tpu.vector_store %arg6[%c0_10, %c128], %25 {strides = array<i32>} : memref<8x256xbf16, #tpu.memory_space<vmem>>, vector<8x128xbf16>,
    %c0_11 = arith.constant 0 : index
    %c0_12 = arith.constant 0 : index
    %27 = vector.load %arg6[%c0_11, %c0_12] : memref<8x256xbf16, #tpu.memory_space<vmem>>, vector<8x256xbf16>
    %cst_13 = arith.constant 0.000000e+00 : f32
    %28 = vector.broadcast %cst_13 : f32 to vector<8x4xf32>
    %c0_14 = arith.constant 0 : index
    %c0_15 = arith.constant 0 : index
    %c8 = arith.constant 8 : index
    %c0_16 = arith.constant 0 : index
    %29 = vector.load %arg5[%c0_14, %c0_15, %c8, %c0_16] : memref<1x1x16x4xf32, #tpu.memory_space<vmem>>, vector<1x1x8x4xf32>
    %30 = vector.shape_cast %29 : vector<1x1x8x4xf32> to vector<8x4xf32>
    %31 = vector.shape_cast %28 : vector<8x4xf32> to vector<1x1x8x4xf32>
    tpu.vector_store %arg5[%c0_14, %c0_15, %c8, %c0_16], %31 {strides = array<i32>} : memref<1x1x16x4xf32, #tpu.memory_space<vmem>>, vector<1x1x8x4xf32>,
    %c0_17 = arith.constant 0 : index
    %c0_18 = arith.constant 0 : index
    %32 = vector.load %arg4[%c0_17, %c0_18] : memref<256x16xbf16, #tpu.memory_space<vmem>>, vector<256x4xbf16>
    %cst_19 = arith.constant dense<0.000000e+00> : vector<8x4xf32>
    %33 = tpu.matmul %27, %32, %cst_19 {dimension_numbers = #tpu.dot_dimension_numbers<[1], [0], [0], [1], [0, 0, 1, 1], [], []>} : vector<8x256xbf16>, vector<256x4xbf16>, vector<8x4xf32> -> vector<8x4xf32>
    %c0_20 = arith.constant 0 : index
    %c0_21 = arith.constant 0 : index
    %c0_22 = arith.constant 0 : index
    %c0_23 = arith.constant 0 : index
    %34 = vector.load %arg5[%c0_20, %c0_21, %c0_22, %c0_23] : memref<1x1x16x4xf32, #tpu.memory_space<vmem>>, vector<1x1x8x4xf32>
    %35 = vector.shape_cast %34 : vector<1x1x8x4xf32> to vector<8x4xf32>
    %36 = vector.shape_cast %33 : vector<8x4xf32> to vector<1x1x8x4xf32>
    tpu.vector_store %arg5[%c0_20, %c0_21, %c0_22, %c0_23], %36 {strides = array<i32>} : memref<1x1x16x4xf32, #tpu.memory_space<vmem>>, vector<1x1x8x4xf32>,
    %c0_24 = arith.constant 0 : index
    %c0_25 = arith.constant 0 : index
    %c1 = arith.constant 1 : index
    %c0_26 = arith.constant 0 : index
    %37 = vector.load %arg5[%c0_24, %c0_25, %c1, %c0_26] : memref<1x1x16x4xf32, #tpu.memory_space<vmem>>, vector<1x1x8x4xf32>
    %38 = vector.shape_cast %37 : vector<1x1x8x4xf32> to vector<8x4xf32>
    %c0_27 = arith.constant 0 : index
    %c4 = arith.constant 4 : index
    %39 = vector.load %arg4[%c0_27, %c4] : memref<256x16xbf16, #tpu.memory_space<vmem>>, vector<256x4xbf16>
    %cst_28 = arith.constant dense<0.000000e+00> : vector<8x4xf32>
    %40 = tpu.matmul %27, %39, %cst_28 {dimension_numbers = #tpu.dot_dimension_numbers<[1], [0], [0], [1], [0, 0, 1, 1], [], []>} : vector<8x256xbf16>, vector<256x4xbf16>, vector<8x4xf32> -> vector<8x4xf32>
    %41 = arith.addf %38, %40 : vector<8x4xf32>
    %c0_29 = arith.constant 0 : index
    %c0_30 = arith.constant 0 : index
    %c1_31 = arith.constant 1 : index
    %c0_32 = arith.constant 0 : index
    %42 = vector.load %arg5[%c0_29, %c0_30, %c1_31, %c0_32] : memref<1x1x16x4xf32, #tpu.memory_space<vmem>>, vector<1x1x8x4xf32>
    %43 = vector.shape_cast %42 : vector<1x1x8x4xf32> to vector<8x4xf32>
    %44 = vector.shape_cast %41 : vector<8x4xf32> to vector<1x1x8x4xf32>
    tpu.vector_store %arg5[%c0_29, %c0_30, %c1_31, %c0_32], %44 {strides = array<i32>} : memref<1x1x16x4xf32, #tpu.memory_space<vmem>>, vector<1x1x8x4xf32>,
    %c0_33 = arith.constant 0 : index
    %c0_34 = arith.constant 0 : index
    %c2 = arith.constant 2 : index
    %c0_35 = arith.constant 0 : index
    %45 = vector.load %arg5[%c0_33, %c0_34, %c2, %c0_35] : memref<1x1x16x4xf32, #tpu.memory_space<vmem>>, vector<1x1x8x4xf32>
    %46 = vector.shape_cast %45 : vector<1x1x8x4xf32> to vector<8x4xf32>
    %c0_36 = arith.constant 0 : index
    %c8_37 = arith.constant 8 : index
    %47 = vector.load %arg4[%c0_36, %c8_37] : memref<256x16xbf16, #tpu.memory_space<vmem>>, vector<256x4xbf16>
    %cst_38 = arith.constant dense<0.000000e+00> : vector<8x4xf32>
    %48 = tpu.matmul %27, %47, %cst_38 {dimension_numbers = #tpu.dot_dimension_numbers<[1], [0], [0], [1], [0, 0, 1, 1], [], []>} : vector<8x256xbf16>, vector<256x4xbf16>, vector<8x4xf32> -> vector<8x4xf32>
    %49 = arith.addf %46, %48 : vector<8x4xf32>
    %c0_39 = arith.constant 0 : index
    %c0_40 = arith.constant 0 : index
    %c2_41 = arith.constant 2 : index
    %c0_42 = arith.constant 0 : index
    %50 = vector.load %arg5[%c0_39, %c0_40, %c2_41, %c0_42] : memref<1x1x16x4xf32, #tpu.memory_space<vmem>>, vector<1x1x8x4xf32>
    %51 = vector.shape_cast %50 : vector<1x1x8x4xf32> to vector<8x4xf32>
    %52 = vector.shape_cast %49 : vector<8x4xf32> to vector<1x1x8x4xf32>
    tpu.vector_store %arg5[%c0_39, %c0_40, %c2_41, %c0_42], %52 {strides = array<i32>} : memref<1x1x16x4xf32, #tpu.memory_space<vmem>>, vector<1x1x8x4xf32>,
    %c0_43 = arith.constant 0 : index
    %c0_44 = arith.constant 0 : index
    %c3 = arith.constant 3 : index
    %c0_45 = arith.constant 0 : index
    %53 = vector.load %arg5[%c0_43, %c0_44, %c3, %c0_45] : memref<1x1x16x4xf32, #tpu.memory_space<vmem>>, vector<1x1x8x4xf32>
    %54 = vector.shape_cast %53 : vector<1x1x8x4xf32> to vector<8x4xf32>
    %c0_46 = arith.constant 0 : index
    %c12 = arith.constant 12 : index
    %55 = vector.load %arg4[%c0_46, %c12] : memref<256x16xbf16, #tpu.memory_space<vmem>>, vector<256x4xbf16>
    %cst_47 = arith.constant dense<0.000000e+00> : vector<8x4xf32>
    %56 = tpu.matmul %27, %55, %cst_47 {dimension_numbers = #tpu.dot_dimension_numbers<[1], [0], [0], [1], [0, 0, 1, 1], [], []>} : vector<8x256xbf16>, vector<256x4xbf16>, vector<8x4xf32> -> vector<8x4xf32>
    %57 = arith.addf %54, %56 : vector<8x4xf32>
    %c0_48 = arith.constant 0 : index
    %c0_49 = arith.constant 0 : index
    %c3_50 = arith.constant 3 : index
    %c0_51 = arith.constant 0 : index
    %58 = vector.load %arg5[%c0_48, %c0_49, %c3_50, %c0_51] : memref<1x1x16x4xf32, #tpu.memory_space<vmem>>, vector<1x1x8x4xf32>
    %59 = vector.shape_cast %58 : vector<1x1x8x4xf32> to vector<8x4xf32>
    %60 = vector.shape_cast %57 : vector<8x4xf32> to vector<1x1x8x4xf32>
    tpu.vector_store %arg5[%c0_48, %c0_49, %c3_50, %c0_51], %60 {strides = array<i32>} : memref<1x1x16x4xf32, #tpu.memory_space<vmem>>, vector<1x1x8x4xf32>,
    return
  }
  func.func @transform_0(%arg0: i32, %arg1: i32) -> (i32, i32, i32) {
    %c0_i32 = arith.constant 0 : i32
    %c0_i32_0 = arith.constant 0 : i32
    return %arg0, %arg1, %c0_i32 : i32, i32, i32
  }
  func.func @transform_1(%arg0: i32, %arg1: i32) -> (i32, i32, i32) {
    %c0_i32 = arith.constant 0 : i32
    %c0_i32_0 = arith.constant 0 : i32
    return %arg0, %arg1, %c0_i32 : i32, i32, i32
  }
  func.func @transform_2(%arg0: i32, %arg1: i32) -> (i32, i32) {
    %c0_i32 = arith.constant 0 : i32
    %c0_i32_0 = arith.constant 0 : i32
    %c0_i32_1 = arith.constant 0 : i32
    return %c0_i32, %c0_i32_0 : i32, i32
  }
  func.func @transform_3(%arg0: i32, %arg1: i32) -> (i32, i32, i32, i32) {
    %c0_i32 = arith.constant 0 : i32
    %c0_i32_0 = arith.constant 0 : i32
    %c0_i32_1 = arith.constant 0 : i32
    return %arg0, %arg1, %c0_i32, %c0_i32_0 : i32, i32, i32, i32
  }
}

module attributes {stable_mosaic.version = 11 : i64} {
  func.func @_analysis_kernel(%arg0: i32, %arg1: i32, %arg2: memref<1x8x4xf32, #tpu.memory_space<vmem>>, %arg3: memref<1x8x4xf32, #tpu.memory_space<vmem>>, %arg4: memref<16x256xbf16, #tpu.memory_space<vmem>>, %arg5: memref<1x8x256xf32, #tpu.memory_space<vmem>>, %arg6: memref<16x4xf32, #tpu.memory_space<vmem>>, %arg7: memref<8x16xbf16, #tpu.memory_space<vmem>>) attributes {dimension_semantics = [#tpu.dimension_semantics<parallel>, #tpu.dimension_semantics<parallel>], iteration_bounds = array<i64: 2, 1>, scalar_prefetch = 0 : i64, scratch_operands = 2 : i64, tpu.core_type = #tpu.core_type<tc>, window_params = [{transform_indices = @transform_0, window_bounds = array<i64: 1, 8, 4>}, {transform_indices = @transform_1, window_bounds = array<i64: 1, 8, 4>}, {pipeline_mode = #tpu.pipeline_mode<synchronous>, transform_indices = @transform_2, window_bounds = array<i64: 16, 256>}, {transform_indices = @transform_3, window_bounds = array<i64: 1, 8, 256>}]} {
    %c0 = arith.constant 0 : index
    %c0_0 = arith.constant 0 : index
    %c0_1 = arith.constant 0 : index
    %0 = vector.load %arg2[%c0, %c0_0, %c0_1] : memref<1x8x4xf32, #tpu.memory_space<vmem>>, vector<1x8x4xf32>
    %1 = vector.shape_cast %0 : vector<1x8x4xf32> to vector<8x4xf32>
    %c0_2 = arith.constant 0 : index
    %c0_3 = arith.constant 0 : index
    %2 = vector.load %arg6[%c0_2, %c0_3] : memref<16x4xf32, #tpu.memory_space<vmem>>, vector<8x4xf32>
    tpu.vector_store %arg6[%c0_2, %c0_3], %1 {strides = array<i32>} : memref<16x4xf32, #tpu.memory_space<vmem>>, vector<8x4xf32>,
    %c0_4 = arith.constant 0 : index
    %c0_5 = arith.constant 0 : index
    %c0_6 = arith.constant 0 : index
    %3 = vector.load %arg3[%c0_4, %c0_5, %c0_6] : memref<1x8x4xf32, #tpu.memory_space<vmem>>, vector<1x8x4xf32>
    %4 = vector.shape_cast %3 : vector<1x8x4xf32> to vector<8x4xf32>
    %c8 = arith.constant 8 : index
    %c0_7 = arith.constant 0 : index
    %5 = vector.load %arg6[%c8, %c0_7] : memref<16x4xf32, #tpu.memory_space<vmem>>, vector<8x4xf32>
    tpu.vector_store %arg6[%c8, %c0_7], %4 {strides = array<i32>} : memref<16x4xf32, #tpu.memory_space<vmem>>, vector<8x4xf32>,
    %c0_8 = arith.constant 0 : index
    %c0_9 = arith.constant 0 : index
    %6 = vector.load %arg6[%c0_8, %c0_9] : memref<16x4xf32, #tpu.memory_space<vmem>>, vector<8x4xf32>
    %7 = arith.truncf %6 : vector<8x4xf32> to vector<8x4xbf16>
    %c0_10 = arith.constant 0 : index
    %c0_11 = arith.constant 0 : index
    %8 = vector.load %arg7[%c0_10, %c0_11] : memref<8x16xbf16, #tpu.memory_space<vmem>>, vector<8x4xbf16>
    tpu.vector_store %arg7[%c0_10, %c0_11], %7 {strides = array<i32>} : memref<8x16xbf16, #tpu.memory_space<vmem>>, vector<8x4xbf16>,
    %c1 = arith.constant 1 : index
    %c0_12 = arith.constant 0 : index
    %9 = vector.load %arg6[%c1, %c0_12] : memref<16x4xf32, #tpu.memory_space<vmem>>, vector<8x4xf32>
    %10 = arith.truncf %9 : vector<8x4xf32> to vector<8x4xbf16>
    %c0_13 = arith.constant 0 : index
    %c4 = arith.constant 4 : index
    %11 = vector.load %arg7[%c0_13, %c4] : memref<8x16xbf16, #tpu.memory_space<vmem>>, vector<8x4xbf16>
    tpu.vector_store %arg7[%c0_13, %c4], %10 {strides = array<i32>} : memref<8x16xbf16, #tpu.memory_space<vmem>>, vector<8x4xbf16>,
    %c2 = arith.constant 2 : index
    %c0_14 = arith.constant 0 : index
    %12 = vector.load %arg6[%c2, %c0_14] : memref<16x4xf32, #tpu.memory_space<vmem>>, vector<8x4xf32>
    %13 = arith.truncf %12 : vector<8x4xf32> to vector<8x4xbf16>
    %c0_15 = arith.constant 0 : index
    %c8_16 = arith.constant 8 : index
    %14 = vector.load %arg7[%c0_15, %c8_16] : memref<8x16xbf16, #tpu.memory_space<vmem>>, vector<8x4xbf16>
    tpu.vector_store %arg7[%c0_15, %c8_16], %13 {strides = array<i32>} : memref<8x16xbf16, #tpu.memory_space<vmem>>, vector<8x4xbf16>,
    %c3 = arith.constant 3 : index
    %c0_17 = arith.constant 0 : index
    %15 = vector.load %arg6[%c3, %c0_17] : memref<16x4xf32, #tpu.memory_space<vmem>>, vector<8x4xf32>
    %16 = arith.truncf %15 : vector<8x4xf32> to vector<8x4xbf16>
    %c0_18 = arith.constant 0 : index
    %c12 = arith.constant 12 : index
    %17 = vector.load %arg7[%c0_18, %c12] : memref<8x16xbf16, #tpu.memory_space<vmem>>, vector<8x4xbf16>
    tpu.vector_store %arg7[%c0_18, %c12], %16 {strides = array<i32>} : memref<8x16xbf16, #tpu.memory_space<vmem>>, vector<8x4xbf16>,
    %c0_19 = arith.constant 0 : index
    %c0_20 = arith.constant 0 : index
    %18 = vector.load %arg7[%c0_19, %c0_20] : memref<8x16xbf16, #tpu.memory_space<vmem>>, vector<8x16xbf16>
    %c0_21 = arith.constant 0 : index
    %c0_22 = arith.constant 0 : index
    %19 = vector.load %arg4[%c0_21, %c0_22] : memref<16x256xbf16, #tpu.memory_space<vmem>>, vector<16x256xbf16>
    %cst = arith.constant dense<0.000000e+00> : vector<8x256xf32>
    %20 = tpu.matmul %18, %19, %cst {dimension_numbers = #tpu.dot_dimension_numbers<[1], [0], [0], [1], [0, 0, 1, 1], [], []>} : vector<8x16xbf16>, vector<16x256xbf16>, vector<8x256xf32> -> vector<8x256xf32>
    %c0_23 = arith.constant 0 : index
    %c0_24 = arith.constant 0 : index
    %c0_25 = arith.constant 0 : index
    %21 = vector.load %arg5[%c0_23, %c0_24, %c0_25] : memref<1x8x256xf32, #tpu.memory_space<vmem>>, vector<1x8x256xf32>
    %22 = vector.shape_cast %21 : vector<1x8x256xf32> to vector<8x256xf32>
    %23 = vector.shape_cast %20 : vector<8x256xf32> to vector<1x8x256xf32>
    tpu.vector_store %arg5[%c0_23, %c0_24, %c0_25], %23 {strides = array<i32>} : memref<1x8x256xf32, #tpu.memory_space<vmem>>, vector<1x8x256xf32>,
    return
  }
  func.func @transform_0(%arg0: i32, %arg1: i32) -> (i32, i32, i32) {
    %c0_i32 = arith.constant 0 : i32
    %c0_i32_0 = arith.constant 0 : i32
    return %arg0, %arg1, %c0_i32 : i32, i32, i32
  }
  func.func @transform_1(%arg0: i32, %arg1: i32) -> (i32, i32, i32) {
    %c1_i32 = arith.constant 1 : i32
    %0 = arith.addi %arg1, %c1_i32 : i32
    %c1_i32_0 = arith.constant 1 : i32
    %1 = arith.muli %0, %c1_i32_0 : i32
    %c0_i32 = arith.constant 0 : i32
    %c0_i32_1 = arith.constant 0 : i32
    return %arg0, %1, %c0_i32 : i32, i32, i32
  }
  func.func @transform_2(%arg0: i32, %arg1: i32) -> (i32, i32) {
    %c0_i32 = arith.constant 0 : i32
    %c0_i32_0 = arith.constant 0 : i32
    %c0_i32_1 = arith.constant 0 : i32
    return %c0_i32, %c0_i32_0 : i32, i32
  }
  func.func @transform_3(%arg0: i32, %arg1: i32) -> (i32, i32, i32) {
    %c0_i32 = arith.constant 0 : i32
    %c0_i32_0 = arith.constant 0 : i32
    return %arg0, %arg1, %c0_i32 : i32, i32, i32
  }
}

</mosaic_0001>

<llo_original>
// kernel: mul.9
$region0: #{mul.9}
  #allocation0 [shape = 's32[1]{0}', space=sflag, size = 0x4, scoped, tag = 'scoped memory for mul.9']
  %s0 = inlined_call_operand.vmem [shape: f32[16], index: 0, kind: input, shape index: {}, may-alias: {0,1}]
  %s1 = inlined_call_operand.vmem [shape: f32[16], index: 1, kind: input, shape index: {}, may-alias: {0,1}]
  %s2 = inlined_call_operand.vmem [shape: f32[16], index: 2, kind: output, shape index: {}]
  %v3 = vld [vmem:[%s0] sm:$0x1]
  %v4 = vld [vmem:[%s1] sm:$0x1]
  %5 = xla_tuple %v3, %v4
  %6 = xla_tuple %5
  %v7 = vmul.f32 %v3, %v4
  %8 = xla_tuple %v7
  %9 = vst [vmem:[%s2] sm:$0x1] %v7

// kernel: closed_call.14
$region0: #{closed_call.14}
  #allocation0 [shape = 'u32[]', space=smem, size = 0x4, offset = 0x4, fixed_abs, tag = 'smem constant byte address 0x4 - core index']
  #allocation1 [shape = 'u32[144,128]{1,0:T(1,128)}', space=vmem, size = 0x12000, scoped, tag = 'internal scratch']
  #allocation2 [shape = 'f32[16,4]{1,0:T(8,128)}', space=vmem, size = 0x2000, scoped, tag = 'scratch operand']
  #allocation3 [shape = 'bf16[8,16]{1,0:T(8,128)(2,1)}', space=vmem, size = 0x800, scoped, tag = 'scratch operand']
  %s0 = inlined_call_operand.vmem [shape: f32[2,16,4], index: 0, kind: input, shape index: {}, may-alias: {0,1}]
  %s1 = inlined_call_operand.vmem [shape: f32[2,16,4], index: 1, kind: input, shape index: {}, may-alias: {0,1}]
  %s2 = inlined_call_operand.vmem [shape: bf16[16,256], index: 2, kind: input, shape index: {}]
  %s3 = inlined_call_operand.vmem [shape: f32[2,8,256], index: 3, kind: output, shape index: {}]
  %s4 = sld [smem:[#allocation0]]
  $region45: #{closed_call.14} parent=0
    _
  %s6 = ssub.s32 1, %s4
  %s7 = scalar_select 0, %s6, %s4
  loop: start=0, step=1, limit=4
  $region2: #{closed_call.14} parent=0 // loop_pre_header
    _
  $region3: #{closed_call.14} parent=0 // loop_header
    %s9 = sphi 0, %s13
    %p10 = scmp.ge.s32.totalorder %s9, 4
    %s16 = sphi 0, %s28
    %s17 = sphi 0, %s24
    %s18 = sphi 0, %s16
    %s19 = sphi 0, %s17
    %s20 = sphi 0, %s18
    %s21 = sphi 0, %s19
    %s33 = sphi 0, %s35
    %s36 = sphi 0, %s33
    %s37 = sphi 0, %s36
    %s53 = sphi 0, %s37
    %s63 = sphi 0, %s65
    %s66 = sphi 0, %s63
    %s67 = sphi 0, %s66
    %s83 = sphi 0, %s67
    %s87 = sphi 0, %s87
    %s89 = sphi 0, %s87
    %s90 = sphi 0, %s89
    %s104 = sphi 0, %s90
    %s112 = sphi 0, %s114
    %s115 = sphi 0, %s112
    %s116 = sphi 0, %s115
    %s132 = sphi 0, %s116
  $region4: #{closed_call.14} parent=0 // loop_header_branch
    %12 = sbr.rel (%p10) target = $region8
  $region5: #{closed_call.14} parent=0 // loop_body
    %s14 = ssub.s32 %s9, 1
    %s15 = ssub.s32 %s9, 2
    %s22 = sadd.s32 1, %s17
    %p23 = scmp.ge.s32.totalorder %s22, 1
    %s24 = scalar_select %p23, 0, %s22
    %s25 = sadd.s32 1, %s16
    %s26 = scalar_select %p23, %s25, %s16
    %p27 = scmp.ge.s32.totalorder %s26, 2
    %s28 = scalar_select %p27, 0, %s26
    %s29 = ssub.s32 %s16, %s28
    %s30 = ssub.s32 %s17, %s24
    %s31 = sor.u32 %s29, %s30
    %p32 = scmp.eq.s32.totalorder %s31, 0
    %s34 = sadd.s32 %s33, 1
    %s35 = scalar_select %p32, %s33, %s34
    %p38 = pneg %p32
    %p39 = scmp.eq.s32.totalorder %s9, 1
    %p40 = por %p38, %p39
    %p41 = scmp.ne.s32.totalorder %s33, %s36
    %p42 = scmp.eq.s32.totalorder %s9, 0
    %p43 = por %p41, %p42
    %p44 = scmp.ne.s32.totalorder %s33, %s36
    %p45 = scmp.eq.s32.totalorder %s14, 1
    %p46 = por %p44, %p45
    %p47 = scmp.ne.s32.totalorder %s36, %s37
    %p48 = scmp.eq.s32.totalorder %s14, 0
    %p49 = por %p47, %p48
    %p50 = scmp.ne.s32.totalorder %s36, %s37
    %p51 = scmp.eq.s32.totalorder %s15, 1
    %p52 = por %p50, %p51
    %p54 = scmp.ne.s32.totalorder %s37, %s53
    %p55 = scmp.eq.s32.totalorder %s15, 0
    %p56 = por %p54, %p55
    %s57 = sadd.s32 %s17, 1
    %s58 = sadd.s32 %s24, 1
    %s59 = ssub.s32 %s16, %s28
    %s60 = ssub.s32 %s57, %s58
    %s61 = sor.u32 %s59, %s60
    %p62 = scmp.eq.s32.totalorder %s61, 0
    %s64 = sadd.s32 %s63, 1
    %s65 = scalar_select %p62, %s63, %s64
    %p68 = pneg %p62
    %p69 = scmp.eq.s32.totalorder %s9, 1
    %p70 = por %p68, %p69
    %p71 = scmp.ne.s32.totalorder %s63, %s66
    %p72 = scmp.eq.s32.totalorder %s9, 0
    %p73 = por %p71, %p72
    %p74 = scmp.ne.s32.totalorder %s63, %s66
    %p75 = scmp.eq.s32.totalorder %s14, 1
    %p76 = por %p74, %p75
    %p77 = scmp.ne.s32.totalorder %s66, %s67
    %p78 = scmp.eq.s32.totalorder %s14, 0
    %p79 = por %p77, %p78
    %p80 = scmp.ne.s32.totalorder %s66, %s67
    %p81 = scmp.eq.s32.totalorder %s15, 1
    %p82 = por %p80, %p81
    %p84 = scmp.ne.s32.totalorder %s67, %s83
    %p85 = scmp.eq.s32.totalorder %s15, 0
    %p86 = por %p84, %p85
    %s88 = sadd.s32 %s87, 1
    %p91 = scmp.eq.s32.totalorder %s9, 1
    %p92 = scmp.ne.s32.totalorder %s87, %s89
    %p93 = scmp.eq.s32.totalorder %s9, 0
    %p94 = por %p92, %p93
    %p95 = scmp.ne.s32.totalorder %s87, %s89
    %p96 = scmp.eq.s32.totalorder %s14, 1
    %p97 = por %p95, %p96
    %p98 = scmp.ne.s32.totalorder %s89, %s90
    %p99 = scmp.eq.s32.totalorder %s14, 0
    %p100 = por %p98, %p99
    %p101 = scmp.ne.s32.totalorder %s89, %s90
    %p102 = scmp.eq.s32.totalorder %s15, 1
    %p103 = por %p101, %p102
    %p105 = scmp.ne.s32.totalorder %s90, %s104
    %p106 = scmp.eq.s32.totalorder %s15, 0
    %p107 = por %p105, %p106
    %s108 = ssub.s32 %s16, %s28
    %s109 = ssub.s32 %s17, %s24
    %s110 = sor.u32 %s108, %s109
    %p111 = scmp.eq.s32.totalorder %s110, 0
    %s113 = sadd.s32 %s112, 1
    %s114 = scalar_select %p111, %s112, %s113
    %p117 = pneg %p111
    %p118 = scmp.eq.s32.totalorder %s9, 1
    %p119 = por %p117, %p118
    %p120 = scmp.ne.s32.totalorder %s112, %s115
    %p121 = scmp.eq.s32.totalorder %s9, 0
    %p122 = por %p120, %p121
    %p123 = scmp.ne.s32.totalorder %s112, %s115
    %p124 = scmp.eq.s32.totalorder %s14, 1
    %p125 = por %p123, %p124
    %p126 = scmp.ne.s32.totalorder %s115, %s116
    %p127 = scmp.eq.s32.totalorder %s14, 0
    %p128 = por %p126, %p127
    %p129 = scmp.ne.s32.totalorder %s115, %s116
    %p130 = scmp.eq.s32.totalorder %s15, 1
    %p131 = por %p129, %p130
    %p133 = scmp.ne.s32.totalorder %s116, %s132
    %p134 = scmp.eq.s32.totalorder %s15, 0
    %p135 = por %p133, %p134
    %p136 = scmp.le.s32.totalorder 1, %s9
    %p137 = scmp.lt.s32.totalorder %s9, 3
    %p138 = pnand %p136, %p137
    %p139 = pneg %p138
    // Predicated region
    $region9: #{closed_call.14} parent=5 // pred_check
      _
    $region10: #{closed_call.14} parent=5 // pred_check_branch
      %141 = sbr.rel (%p138) target = $region12
    $region11: #{closed_call.14} parent=5 // pred_region
      %s142 = ssub.s32 %s9, 1
      // Predicated region
      $region13: #{closed_call.14} parent=11 // pred_check
        %p143 = pneg %p100
      $region14: #{closed_call.14} parent=11 // pred_check_branch
        %145 = sbr.rel (%p143) target = $region16
      $region15: #{closed_call.14} parent=11 // pred_region
        _
      $region16: #{closed_call.14} parent=11 // pred_fallthru
        _
    $region12: #{closed_call.14} parent=5 // pred_fallthru
      _
    %p146 = scmp.lt.s32.totalorder %s9, 2
    // Predicated region
    $region17: #{closed_call.14} parent=5 // pred_check
      %p147 = pneg %p146
    $region18: #{closed_call.14} parent=5 // pred_check_branch
      %149 = sbr.rel (%p147) target = $region20
    $region19: #{closed_call.14} parent=5 // pred_region
      // Predicated region
      $region21: #{closed_call.14} parent=19 // pred_check
        %p150 = pneg %p43
      $region22: #{closed_call.14} parent=19 // pred_check_branch
        %152 = sbr.rel (%p150) target = $region24
      $region23: #{closed_call.14} parent=19 // pred_region
        %p153 = scmp.lt.s32.totalorder %s16, 1
        %s154 = scalar_select %p153, %s16, 1
        %p155 = scmp.lt.s32.totalorder %s17, 1
        %s156 = scalar_select %p155, %s17, 1
        %s157 = smul.addr %s154, 2
        %s158 = sadd.s32 %s156, %s157
        %s159 = smul.addr %s158, 8
        %s160 = scalar_lea.vmem %s0, %s159
      $region24: #{closed_call.14} parent=19 // pred_fallthru
        _
      // Predicated region
      $region25: #{closed_call.14} parent=19 // pred_check
        %p161 = pneg %p73
      $region26: #{closed_call.14} parent=19 // pred_check_branch
        %163 = sbr.rel (%p161) target = $region28
      $region27: #{closed_call.14} parent=19 // pred_region
        %s164 = sadd.s32 %s17, 1
        %p165 = scmp.lt.s32.totalorder %s16, 1
        %s166 = scalar_select %p165, %s16, 1
        %p167 = scmp.lt.s32.totalorder %s164, 1
        %s168 = scalar_select %p167, %s164, 1
        %s169 = smul.addr %s166, 2
        %s170 = sadd.s32 %s168, %s169
        %s171 = smul.addr %s170, 8
        %s172 = scalar_lea.vmem %s1, %s171
        %s173 = sadd.s32 %s17, 1
      $region28: #{closed_call.14} parent=19 // pred_fallthru
        _
    $region20: #{closed_call.14} parent=5 // pred_fallthru
      _
    %p174 = scmp.le.s32.totalorder 1, %s9
    %p175 = scmp.lt.s32.totalorder %s9, 3
    %p176 = pnand %p174, %p175
    %p177 = pneg %p176
    // Predicated region
    $region29: #{closed_call.14} parent=5 // pred_check
      _
    $region30: #{closed_call.14} parent=5 // pred_check_branch
      %179 = sbr.rel (%p176) target = $region32
    $region31: #{closed_call.14} parent=5 // pred_region
      %s180 = ssub.s32 %s9, 1
      %p181 = scmp.lt.s32.totalorder %s18, 1
      %s182 = scalar_select %p181, %s18, 1
      %p183 = scmp.lt.s32.totalorder %s19, 1
      %s184 = scalar_select %p183, %s19, 1
      %s185 = smul.addr %s182, 2
      %s186 = sadd.s32 %s184, %s185
      %s187 = smul.addr %s186, 8
      %s188 = scalar_lea.vmem %s0, %s187
      %p189 = pneg %p49
      %p190 = pneg %p46
      %s191 = sadd.s32 %s19, 1
      %p192 = scmp.lt.s32.totalorder %s18, 1
      %s193 = scalar_select %p192, %s18, 1
      %p194 = scmp.lt.s32.totalorder %s191, 1
      %s195 = scalar_select %p194, %s191, 1
      %s196 = smul.addr %s193, 2
      %s197 = sadd.s32 %s195, %s196
      %s198 = smul.addr %s197, 8
      %s199 = scalar_lea.vmem %s1, %s198
      %p200 = pneg %p79
      %p201 = pneg %p76
      %p202 = pneg %p100
      %p203 = pneg %p97
      %p204 = pneg %p128
      %p205 = pneg %p125
      %p206 = scmp.lt.s32.totalorder %s18, 1
      %s207 = scalar_select %p206, %s18, 1
      %p208 = scmp.lt.s32.totalorder %s19, 0
      %s209 = scalar_select %p208, %s19, 0
      %s210 = smul.addr %s209, 2
      %s211 = smul.addr %s207, 2
      %s212 = sadd.s32 %s210, %s211
      %s213 = smul.addr %s212, 8
      %s214 = scalar_lea.vmem %s3, %s213
      %p215 = scmp.lt.s32.totalorder %s18, 1
      %s216 = scalar_select %p215, %s18, 1
      %p217 = scmp.lt.s32.totalorder %s19, 1
      %s218 = scalar_select %p217, %s19, 1
      %s219 = smul.addr %s216, 2
      %s220 = sadd.s32 %s218, %s219
      %s221 = smul.addr %s220, 8
      %s222 = scalar_lea.vmem %s0, %s221
      %s223 = sadd.s32 %s19, 1
      %p224 = scmp.lt.s32.totalorder %s18, 1
      %s225 = scalar_select %p224, %s18, 1
      %p226 = scmp.lt.s32.totalorder %s223, 1
      %s227 = scalar_select %p226, %s223, 1
      %s228 = smul.addr %s225, 2
      %s229 = sadd.s32 %s227, %s228
      %s230 = smul.addr %s229, 8
      %s231 = scalar_lea.vmem %s1, %s230
      %s232 = sadd.s32 %s19, 1
      %p233 = scmp.lt.s32.totalorder %s18, 1
      %s234 = scalar_select %p233, %s18, 1
      %p235 = scmp.lt.s32.totalorder %s19, 0
      %s236 = scalar_select %p235, %s19, 0
      %s237 = smul.addr %s236, 2
      %s238 = smul.addr %s234, 2
      %s239 = sadd.s32 %s237, %s238
      %s240 = smul.addr %s239, 8
      %s241 = scalar_lea.vmem %s3, %s240
      %v243 = vld [vmem:[%s222] sm:$0xff]
      %vm244 = vcmask 31744
      %245 = vst.msk [vmem:[#allocation2] sm:$0xff] %vm244, %v243
      %v246 = vld [vmem:[%s231] sm:$0xff]
      %247 = vst.msk [vmem:[#allocation2 + $0x8] sm:$0xff] %vm244, %v246
      %v248 = vld [vmem:[#allocation2] sm:$0xff]
      %v249 = vpack.c.bf16 %v248, %v248
      %vm250 = vcmask 27648
      %251 = vst.msk [vmem:[#allocation3] sm:$0xf] %vm250, %v249
      %v252 = vld [vmem:[#allocation2 + $0x1] sm:$0xff]
      %v253 = vpack.c.bf16 %v252, %v252
      %v255 = vunpack.c.l.b16 %v253
      %v256 = vpack.c.b16 %v255, %v255
      %257 = vrot.lane.b32.xlu0 %v256, 4
      %v258 = vpop.permute.xlu0 %257
      %vm260 = vcmask 60448
      %261 = vst.msk [vmem:[#allocation3] sm:$0xf] %vm260, %v258
      %v262 = vld [vmem:[#allocation2 + $0x2] sm:$0xff]
      %v263 = vpack.c.bf16 %v262, %v262
      %v265 = vunpack.c.l.b16 %v263
      %v266 = vpack.c.b16 %v265, %v265
      %267 = vrot.lane.b32.xlu0 %v266, 8
      %v268 = vpop.permute.xlu0 %267
      %vm270 = vcmask 93248
      %271 = vst.msk [vmem:[#allocation3] sm:$0xf] %vm270, %v268
      %v272 = vld [vmem:[#allocation2 + $0x3] sm:$0xff]
      %v273 = vpack.c.bf16 %v272, %v272
      %v275 = vunpack.c.l.b16 %v273
      %v276 = vpack.c.b16 %v275, %v275
      %277 = vrot.lane.b32.xlu0 %v276, 12
      %v278 = vpop.permute.xlu0 %277
      %vm280 = vcmask 126048
      %281 = vst.msk [vmem:[#allocation3] sm:$0xf] %vm280, %v278
      %v282 = vld [vmem:[#allocation3] sm:$0xf]
      %v283 = vld [vmem:[%s2] sm:$0xff]
      %v284 = vld [vmem:[%s2 + $0x8] sm:$0xff]
      %v287 = vunpack.c.l.b16 %v283
      %v288 = vunpack.c.h.b16 %v283
      %v289 = vunpack.c.l.b16 %v284
      %v290 = vunpack.c.h.b16 %v284
      %v291 = vpack.c.b16 %v289, %v287
      %v292 = vpack.c.b16 %v290, %v288
      %vm295 = vcmask 130048
      %v297 = vsel %vm295, %v282, 0
      %299 = vmatprep.subr.bf16.mxu0 0
      %300 = vmatpush1.bf16.msra.mxu0 0
      %301 = vmatprep.subr.bf16.mxu0 0
      %302 = vmatpush1.bf16.msra.mxu0 0
      %303 = vmatprep.subr.bf16.mxu0 0
      %304 = vmatpush1.bf16.msra.mxu0 0
      %305 = vmatprep.subr.bf16.mxu0 0
      %306 = vmatpush1.bf16.msra.mxu0 0
      %307 = vmatprep.subr.bf16.mxu0 0
      %308 = vmatpush1.bf16.msra.mxu0 0
      %309 = vmatprep.subr.bf16.mxu0 0
      %310 = vmatpush1.bf16.msra.mxu0 0
      %311 = vmatprep.subr.bf16.mxu0 0
      %312 = vmatpush1.bf16.msra.mxu0 0
      %313 = vmatprep.subr.bf16.mxu0 %v292
      %314 = vmatpush1.bf16.msra.mxu0 %v291
      %315 = vmatprep.subr.bf16.mxu0 0
      %316 = vmatpush2.bf16.msra.mxu0 0
      %317 = vmatprep.subr.bf16.mxu0 0
      %318 = vmatpush2.bf16.msra.mxu0 0
      %319 = vmatprep.subr.bf16.mxu0 0
      %320 = vmatpush2.bf16.msra.mxu0 0
      %321 = vmatprep.subr.bf16.mxu0 0
      %322 = vmatpush2.bf16.msra.mxu0 0
      %323 = vmatprep.subr.bf16.mxu0 0
      %324 = vmatpush2.bf16.msra.mxu0 0
      %325 = vmatprep.subr.bf16.mxu0 0
      %326 = vmatpush2.bf16.msra.mxu0 0
      %327 = vmatprep.subr.bf16.mxu0 0
      %328 = vmatpush2.bf16.msra.mxu0 0
      %329 = vmatprep.subr.bf16.mxu0 0
      %330 = vmatpush2.bf16.msra.mxu0 0
      %331 = vmatprep.mubr.bf16.mxu0 0
      %332 = vmatmul.mubr.bf16.gmra.mxu0 %v297
      %v333 = vpop.f32.mrf.mxu0
      %v334 = vadd.f32 0.0, %v333
      %v335 = vpop.f32.mrf.mxu0
      %v336 = vadd.f32 0.0, %v335
      %v337 = vpop.f32.mrf.mxu0
      %v338 = vpop.f32.mrf.mxu0
      %339 = vdwg.mxu0
      %340 = vst [vmem:[%s241] sm:$0xff] %v334
      %341 = vst [vmem:[%s241 + $0x8] sm:$0xff] %v336
      %p342 = scmp.lt.s32.totalorder %s18, 1
      %s343 = scalar_select %p342, %s18, 1
      %p344 = scmp.lt.s32.totalorder %s19, 0
      %s345 = scalar_select %p344, %s19, 0
      %s346 = smul.addr %s345, 2
      %s347 = smul.addr %s343, 2
      %s348 = sadd.s32 %s346, %s347
      %s349 = smul.addr %s348, 8
      %s350 = scalar_lea.vmem %s3, %s349
      // Predicated region
      $region33: #{closed_call.14} parent=31 // pred_check
        %p351 = pneg %p125
      $region34: #{closed_call.14} parent=31 // pred_check_branch
        %353 = sbr.rel (%p351) target = $region36
      $region35: #{closed_call.14} parent=31 // pred_region
        _
      $region36: #{closed_call.14} parent=31 // pred_fallthru
        _
    $region32: #{closed_call.14} parent=5 // pred_fallthru
      _
    %p354 = scmp.le.s32.totalorder 2, %s9
    // Predicated region
    $region37: #{closed_call.14} parent=5 // pred_check
      %p355 = pneg %p354
    $region38: #{closed_call.14} parent=5 // pred_check_branch
      %357 = sbr.rel (%p355) target = $region40
    $region39: #{closed_call.14} parent=5 // pred_region
      %s358 = ssub.s32 %s9, 2
      // Predicated region
      $region41: #{closed_call.14} parent=39 // pred_check
        %p359 = pneg %p131
      $region42: #{closed_call.14} parent=39 // pred_check_branch
        %361 = sbr.rel (%p359) target = $region44
      $region43: #{closed_call.14} parent=39 // pred_region
        %p362 = scmp.lt.s32.totalorder %s20, 1
        %s363 = scalar_select %p362, %s20, 1
        %p364 = scmp.lt.s32.totalorder %s21, 0
        %s365 = scalar_select %p364, %s21, 0
        %s366 = smul.addr %s365, 2
        %s367 = smul.addr %s363, 2
        %s368 = sadd.s32 %s366, %s367
        %s369 = smul.addr %s368, 8
        %s370 = scalar_lea.vmem %s3, %s369
      $region44: #{closed_call.14} parent=39 // pred_fallthru
        _
    $region40: #{closed_call.14} parent=5 // pred_fallthru
      _
  $region6: #{closed_call.14} parent=0 // loop_footer
    %s13 = sadd.s32 1, %s9
  $region7: #{closed_call.14} parent=0 // loop_footer_branch
    %8 = sbr.rel target = $region3
  $region8: #{closed_call.14} parent=0 // loop_exit
    _

// kernel: closed_call.13
$region0: #{closed_call.13}
  #allocation0 [shape = 'u32[]', space=smem, size = 0x4, offset = 0x4, fixed_abs, tag = 'smem constant byte address 0x4 - core index']
  #allocation1 [shape = 'u32[144,128]{1,0:T(1,128)}', space=vmem, size = 0x12000, scoped, tag = 'internal scratch']
  #allocation2 [shape = 'bf16[8,256]{1,0:T(8,128)(2,1)}', space=vmem, size = 0x1000, scoped, tag = 'scratch operand']
  %s0 = inlined_call_operand.vmem [shape: bf16[2,8,128], index: 0, kind: input, shape index: {}]
  %s1 = inlined_call_operand.vmem [shape: f32[2,8,256], index: 1, kind: input, shape index: {}]
  %s2 = inlined_call_operand.vmem [shape: bf16[256,16], index: 2, kind: input, shape index: {}]
  %s3 = inlined_call_operand.vmem [shape: f32[2,1,16,4], index: 3, kind: output, shape index: {}]
  %s4 = sld [smem:[#allocation0]]
  $region45: #{closed_call.13} parent=0
    _
  %s6 = ssub.s32 1, %s4
  %s7 = scalar_select 0, %s6, %s4
  loop: start=0, step=1, limit=4
  $region2: #{closed_call.13} parent=0 // loop_pre_header
    _
  $region3: #{closed_call.13} parent=0 // loop_header
    %s9 = sphi 0, %s13
    %p10 = scmp.ge.s32.totalorder %s9, 4
    %s16 = sphi 0, %s28
    %s17 = sphi 0, %s24
    %s18 = sphi 0, %s16
    %s19 = sphi 0, %s17
    %s20 = sphi 0, %s18
    %s21 = sphi 0, %s19
    %s33 = sphi 0, %s35
    %s36 = sphi 0, %s33
    %s37 = sphi 0, %s36
    %s53 = sphi 0, %s37
    %s61 = sphi 0, %s63
    %s64 = sphi 0, %s61
    %s65 = sphi 0, %s64
    %s81 = sphi 0, %s65
    %s85 = sphi 0, %s85
    %s87 = sphi 0, %s85
    %s88 = sphi 0, %s87
    %s102 = sphi 0, %s88
    %s110 = sphi 0, %s112
    %s113 = sphi 0, %s110
    %s114 = sphi 0, %s113
    %s130 = sphi 0, %s114
  $region4: #{closed_call.13} parent=0 // loop_header_branch
    %12 = sbr.rel (%p10) target = $region8
  $region5: #{closed_call.13} parent=0 // loop_body
    %s14 = ssub.s32 %s9, 1
    %s15 = ssub.s32 %s9, 2
    %s22 = sadd.s32 1, %s17
    %p23 = scmp.ge.s32.totalorder %s22, 1
    %s24 = scalar_select %p23, 0, %s22
    %s25 = sadd.s32 1, %s16
    %s26 = scalar_select %p23, %s25, %s16
    %p27 = scmp.ge.s32.totalorder %s26, 2
    %s28 = scalar_select %p27, 0, %s26
    %s29 = ssub.s32 %s16, %s28
    %s30 = ssub.s32 %s17, %s24
    %s31 = sor.u32 %s29, %s30
    %p32 = scmp.eq.s32.totalorder %s31, 0
    %s34 = sadd.s32 %s33, 1
    %s35 = scalar_select %p32, %s33, %s34
    %p38 = pneg %p32
    %p39 = scmp.eq.s32.totalorder %s9, 1
    %p40 = por %p38, %p39
    %p41 = scmp.ne.s32.totalorder %s33, %s36
    %p42 = scmp.eq.s32.totalorder %s9, 0
    %p43 = por %p41, %p42
    %p44 = scmp.ne.s32.totalorder %s33, %s36
    %p45 = scmp.eq.s32.totalorder %s14, 1
    %p46 = por %p44, %p45
    %p47 = scmp.ne.s32.totalorder %s36, %s37
    %p48 = scmp.eq.s32.totalorder %s14, 0
    %p49 = por %p47, %p48
    %p50 = scmp.ne.s32.totalorder %s36, %s37
    %p51 = scmp.eq.s32.totalorder %s15, 1
    %p52 = por %p50, %p51
    %p54 = scmp.ne.s32.totalorder %s37, %s53
    %p55 = scmp.eq.s32.totalorder %s15, 0
    %p56 = por %p54, %p55
    %s57 = ssub.s32 %s16, %s28
    %s58 = ssub.s32 %s17, %s24
    %s59 = sor.u32 %s57, %s58
    %p60 = scmp.eq.s32.totalorder %s59, 0
    %s62 = sadd.s32 %s61, 1
    %s63 = scalar_select %p60, %s61, %s62
    %p66 = pneg %p60
    %p67 = scmp.eq.s32.totalorder %s9, 1
    %p68 = por %p66, %p67
    %p69 = scmp.ne.s32.totalorder %s61, %s64
    %p70 = scmp.eq.s32.totalorder %s9, 0
    %p71 = por %p69, %p70
    %p72 = scmp.ne.s32.totalorder %s61, %s64
    %p73 = scmp.eq.s32.totalorder %s14, 1
    %p74 = por %p72, %p73
    %p75 = scmp.ne.s32.totalorder %s64, %s65
    %p76 = scmp.eq.s32.totalorder %s14, 0
    %p77 = por %p75, %p76
    %p78 = scmp.ne.s32.totalorder %s64, %s65
    %p79 = scmp.eq.s32.totalorder %s15, 1
    %p80 = por %p78, %p79
    %p82 = scmp.ne.s32.totalorder %s65, %s81
    %p83 = scmp.eq.s32.totalorder %s15, 0
    %p84 = por %p82, %p83
    %s86 = sadd.s32 %s85, 1
    %p89 = scmp.eq.s32.totalorder %s9, 1
    %p90 = scmp.ne.s32.totalorder %s85, %s87
    %p91 = scmp.eq.s32.totalorder %s9, 0
    %p92 = por %p90, %p91
    %p93 = scmp.ne.s32.totalorder %s85, %s87
    %p94 = scmp.eq.s32.totalorder %s14, 1
    %p95 = por %p93, %p94
    %p96 = scmp.ne.s32.totalorder %s87, %s88
    %p97 = scmp.eq.s32.totalorder %s14, 0
    %p98 = por %p96, %p97
    %p99 = scmp.ne.s32.totalorder %s87, %s88
    %p100 = scmp.eq.s32.totalorder %s15, 1
    %p101 = por %p99, %p100
    %p103 = scmp.ne.s32.totalorder %s88, %s102
    %p104 = scmp.eq.s32.totalorder %s15, 0
    %p105 = por %p103, %p104
    %s106 = ssub.s32 %s16, %s28
    %s107 = ssub.s32 %s17, %s24
    %s108 = sor.u32 %s106, %s107
    %p109 = scmp.eq.s32.totalorder %s108, 0
    %s111 = sadd.s32 %s110, 1
    %s112 = scalar_select %p109, %s110, %s111
    %p115 = pneg %p109
    %p116 = scmp.eq.s32.totalorder %s9, 1
    %p117 = por %p115, %p116
    %p118 = scmp.ne.s32.totalorder %s110, %s113
    %p119 = scmp.eq.s32.totalorder %s9, 0
    %p120 = por %p118, %p119
    %p121 = scmp.ne.s32.totalorder %s110, %s113
    %p122 = scmp.eq.s32.totalorder %s14, 1
    %p123 = por %p121, %p122
    %p124 = scmp.ne.s32.totalorder %s113, %s114
    %p125 = scmp.eq.s32.totalorder %s14, 0
    %p126 = por %p124, %p125
    %p127 = scmp.ne.s32.totalorder %s113, %s114
    %p128 = scmp.eq.s32.totalorder %s15, 1
    %p129 = por %p127, %p128
    %p131 = scmp.ne.s32.totalorder %s114, %s130
    %p132 = scmp.eq.s32.totalorder %s15, 0
    %p133 = por %p131, %p132
    %p134 = scmp.le.s32.totalorder 1, %s9
    %p135 = scmp.lt.s32.totalorder %s9, 3
    %p136 = pnand %p134, %p135
    %p137 = pneg %p136
    // Predicated region
    $region9: #{closed_call.13} parent=5 // pred_check
      _
    $region10: #{closed_call.13} parent=5 // pred_check_branch
      %139 = sbr.rel (%p136) target = $region12
    $region11: #{closed_call.13} parent=5 // pred_region
      %s140 = ssub.s32 %s9, 1
      // Predicated region
      $region13: #{closed_call.13} parent=11 // pred_check
        %p141 = pneg %p98
      $region14: #{closed_call.13} parent=11 // pred_check_branch
        %143 = sbr.rel (%p141) target = $region16
      $region15: #{closed_call.13} parent=11 // pred_region
        _
      $region16: #{closed_call.13} parent=11 // pred_fallthru
        _
    $region12: #{closed_call.13} parent=5 // pred_fallthru
      _
    %p144 = scmp.lt.s32.totalorder %s9, 2
    // Predicated region
    $region17: #{closed_call.13} parent=5 // pred_check
      %p145 = pneg %p144
    $region18: #{closed_call.13} parent=5 // pred_check_branch
      %147 = sbr.rel (%p145) target = $region20
    $region19: #{closed_call.13} parent=5 // pred_region
      // Predicated region
      $region21: #{closed_call.13} parent=19 // pred_check
        %p148 = pneg %p43
      $region22: #{closed_call.13} parent=19 // pred_check_branch
        %150 = sbr.rel (%p148) target = $region24
      $region23: #{closed_call.13} parent=19 // pred_region
        %p151 = scmp.lt.s32.totalorder %s16, 1
        %s152 = scalar_select %p151, %s16, 1
        %p153 = scmp.lt.s32.totalorder %s17, 0
        %s154 = scalar_select %p153, %s17, 0
        %s155 = sadd.s32 %s154, %s152
        %s156 = smul.addr %s155, 4
        %s157 = scalar_lea.vmem %s0, %s156
      $region24: #{closed_call.13} parent=19 // pred_fallthru
        _
      // Predicated region
      $region25: #{closed_call.13} parent=19 // pred_check
        %p158 = pneg %p71
      $region26: #{closed_call.13} parent=19 // pred_check_branch
        %160 = sbr.rel (%p158) target = $region28
      $region27: #{closed_call.13} parent=19 // pred_region
        %p161 = scmp.lt.s32.totalorder %s16, 1
        %s162 = scalar_select %p161, %s16, 1
        %p163 = scmp.lt.s32.totalorder %s17, 0
        %s164 = scalar_select %p163, %s17, 0
        %s165 = smul.addr %s164, 2
        %s166 = smul.addr %s162, 2
        %s167 = sadd.s32 %s165, %s166
        %s168 = smul.addr %s167, 8
        %s169 = scalar_lea.vmem %s1, %s168
      $region28: #{closed_call.13} parent=19 // pred_fallthru
        _
    $region20: #{closed_call.13} parent=5 // pred_fallthru
      _
    %p170 = scmp.le.s32.totalorder 1, %s9
    %p171 = scmp.lt.s32.totalorder %s9, 3
    %p172 = pnand %p170, %p171
    %p173 = pneg %p172
    // Predicated region
    $region29: #{closed_call.13} parent=5 // pred_check
      _
    $region30: #{closed_call.13} parent=5 // pred_check_branch
      %175 = sbr.rel (%p172) target = $region32
    $region31: #{closed_call.13} parent=5 // pred_region
      %s176 = ssub.s32 %s9, 1
      %p177 = scmp.lt.s32.totalorder %s18, 1
      %s178 = scalar_select %p177, %s18, 1
      %p179 = scmp.lt.s32.totalorder %s19, 0
      %s180 = scalar_select %p179, %s19, 0
      %s181 = sadd.s32 %s180, %s178
      %s182 = smul.addr %s181, 4
      %s183 = scalar_lea.vmem %s0, %s182
      %p184 = pneg %p49
      %p185 = pneg %p46
      %p186 = scmp.lt.s32.totalorder %s18, 1
      %s187 = scalar_select %p186, %s18, 1
      %p188 = scmp.lt.s32.totalorder %s19, 0
      %s189 = scalar_select %p188, %s19, 0
      %s190 = smul.addr %s189, 2
      %s191 = smul.addr %s187, 2
      %s192 = sadd.s32 %s190, %s191
      %s193 = smul.addr %s192, 8
      %s194 = scalar_lea.vmem %s1, %s193
      %p195 = pneg %p77
      %p196 = pneg %p74
      %p197 = pneg %p98
      %p198 = pneg %p95
      %p199 = pneg %p126
      %p200 = pneg %p123
      %p201 = scmp.lt.s32.totalorder %s18, 1
      %s202 = scalar_select %p201, %s18, 1
      %p203 = scmp.lt.s32.totalorder %s19, 0
      %s204 = scalar_select %p203, %s19, 0
      %s205 = smul.addr %s204, 2
      %s206 = smul.addr %s202, 2
      %s207 = sadd.s32 %s205, %s206
      %s208 = smul.addr %s207, 8
      %s209 = scalar_lea.vmem %s3, %s208
      %p210 = scmp.lt.s32.totalorder %s18, 1
      %s211 = scalar_select %p210, %s18, 1
      %p212 = scmp.lt.s32.totalorder %s19, 0
      %s213 = scalar_select %p212, %s19, 0
      %s214 = sadd.s32 %s213, %s211
      %s215 = smul.addr %s214, 4
      %s216 = scalar_lea.vmem %s0, %s215
      %p217 = scmp.lt.s32.totalorder %s18, 1
      %s218 = scalar_select %p217, %s18, 1
      %p219 = scmp.lt.s32.totalorder %s19, 0
      %s220 = scalar_select %p219, %s19, 0
      %s221 = smul.addr %s220, 2
      %s222 = smul.addr %s218, 2
      %s223 = sadd.s32 %s221, %s222
      %s224 = smul.addr %s223, 8
      %s225 = scalar_lea.vmem %s1, %s224
      %p226 = scmp.lt.s32.totalorder %s18, 1
      %s227 = scalar_select %p226, %s18, 1
      %p228 = scmp.lt.s32.totalorder %s19, 0
      %s229 = scalar_select %p228, %s19, 0
      %s230 = smul.addr %s229, 2
      %s231 = smul.addr %s227, 2
      %s232 = sadd.s32 %s230, %s231
      %s233 = smul.addr %s232, 8
      %s234 = scalar_lea.vmem %s3, %s233
      %v236 = vld [vmem:[%s216] sm:$0xf]
      %v237 = vunpack.c.l.bf16 %v236
      %v238 = vld [vmem:[%s225] sm:$0xff]
      %v239 = vld [vmem:[%s225 + $0x8] sm:$0xff]
      %v240 = vmul.f32 %v238, %v238
      %v241 = vmul.f32 %v239, %v239
      %v242 = vadd.f32 %v240, %v241
      %vm243 = vcmp.gt.f32.partialorder %v242, 0.0
      %v244 = vsel %vm243, %v242, 1.0
      %v245 = vrsqrt.pop %v244
      %v246 = vmul.f32 %v238, %v245
      %v247 = vsel %vm243, %v246, 1.0
      %v248 = vmul.f32 %v239, %v245
      %v249 = vsel %vm243, %v248, 0.0
      %v250 = vmul.f32 %v237, %v247
      %v251 = vpack.c.bf16 %v250, %v250
      %252 = vst [vmem:[#allocation2] sm:$0xf] %v251
      %v253 = vmul.f32 %v237, %v249
      %v254 = vpack.c.bf16 %v253, %v253
      %255 = vst [vmem:[#allocation2 + $0x4] sm:$0xf] %v254
      %v256 = vld [vmem:[#allocation2] sm:$0xff]
      %vm257 = vcmask 31744
      %258 = vst.msk [vmem:[%s234 + $0x8] sm:$0xff] %vm257, 0.0
      %v259 = vld [vmem:[%s2] sm:$0xf]
      %v260 = vld [vmem:[%s2 + $0x4] sm:$0xf]
      %v261 = vld [vmem:[%s2 + $0x8] sm:$0xf]
      %v262 = vld [vmem:[%s2 + $0xc] sm:$0xf]
      %v263 = vld [vmem:[%s2 + $0x10] sm:$0xf]
      %v264 = vld [vmem:[%s2 + $0x14] sm:$0xf]
      %v265 = vld [vmem:[%s2 + $0x18] sm:$0xf]
      %v266 = vld [vmem:[%s2 + $0x1c] sm:$0xf]
      %v267 = vld [vmem:[%s2 + $0x20] sm:$0xf]
      %v268 = vld [vmem:[%s2 + $0x24] sm:$0xf]
      %v269 = vld [vmem:[%s2 + $0x28] sm:$0xf]
      %v270 = vld [vmem:[%s2 + $0x2c] sm:$0xf]
      %v271 = vld [vmem:[%s2 + $0x30] sm:$0xf]
      %v272 = vld [vmem:[%s2 + $0x34] sm:$0xf]
      %v273 = vld [vmem:[%s2 + $0x38] sm:$0xf]
      %v274 = vld [vmem:[%s2 + $0x3c] sm:$0xf]
      %v275 = vld [vmem:[%s2 + $0x40] sm:$0xf]
      %v276 = vld [vmem:[%s2 + $0x44] sm:$0xf]
      %v277 = vld [vmem:[%s2 + $0x48] sm:$0xf]
      %v278 = vld [vmem:[%s2 + $0x4c] sm:$0xf]
      %v279 = vld [vmem:[%s2 + $0x50] sm:$0xf]
      %v280 = vld [vmem:[%s2 + $0x54] sm:$0xf]
      %v281 = vld [vmem:[%s2 + $0x58] sm:$0xf]
      %v282 = vld [vmem:[%s2 + $0x5c] sm:$0xf]
      %v283 = vld [vmem:[%s2 + $0x60] sm:$0xf]
      %v284 = vld [vmem:[%s2 + $0x64] sm:$0xf]
      %v285 = vld [vmem:[%s2 + $0x68] sm:$0xf]
      %v286 = vld [vmem:[%s2 + $0x6c] sm:$0xf]
      %v287 = vld [vmem:[%s2 + $0x70] sm:$0xf]
      %v288 = vld [vmem:[%s2 + $0x74] sm:$0xf]
      %v289 = vld [vmem:[%s2 + $0x78] sm:$0xf]
      %v290 = vld [vmem:[%s2 + $0x7c] sm:$0xf]
      %v292 = vunpack.c.l.b16 %v256
      %v293 = vunpack.c.h.b16 %v256
      %v294 = vpack.c.b16 %v292, %v292
      %v295 = vpack.c.b16 %v293, %v293
      %v330 = vunpack.c.l.b16 %v259
      %v331 = vunpack.c.l.b16 %v260
      %v332 = vunpack.c.l.b16 %v261
      %v333 = vunpack.c.l.b16 %v262
      %v334 = vunpack.c.l.b16 %v263
      %v335 = vunpack.c.l.b16 %v264
      %v336 = vunpack.c.l.b16 %v265
      %v337 = vunpack.c.l.b16 %v266
      %v338 = vunpack.c.l.b16 %v267
      %v339 = vunpack.c.l.b16 %v268
      %v340 = vunpack.c.l.b16 %v269
      %v341 = vunpack.c.l.b16 %v270
      %v342 = vunpack.c.l.b16 %v271
      %v343 = vunpack.c.l.b16 %v272
      %v344 = vunpack.c.l.b16 %v273
      %v345 = vunpack.c.l.b16 %v274
      %v346 = vunpack.c.l.b16 %v275
      %v347 = vunpack.c.l.b16 %v276
      %v348 = vunpack.c.l.b16 %v277
      %v349 = vunpack.c.l.b16 %v278
      %v350 = vunpack.c.l.b16 %v279
      %v351 = vunpack.c.l.b16 %v280
      %v352 = vunpack.c.l.b16 %v281
      %v353 = vunpack.c.l.b16 %v282
      %v354 = vunpack.c.l.b16 %v283
      %v355 = vunpack.c.l.b16 %v284
      %v356 = vunpack.c.l.b16 %v285
      %v357 = vunpack.c.l.b16 %v286
      %v358 = vunpack.c.l.b16 %v287
      %v359 = vunpack.c.l.b16 %v288
      %v360 = vunpack.c.l.b16 %v289
      %v361 = vunpack.c.l.b16 %v290
      %v362 = vpack.c.b16 %v331, %v330
      %v363 = vpack.c.b16 %v333, %v332
      %v364 = vpack.c.b16 %v335, %v334
      %v365 = vpack.c.b16 %v337, %v336
      %v366 = vpack.c.b16 %v339, %v338
      %v367 = vpack.c.b16 %v341, %v340
      %v368 = vpack.c.b16 %v343, %v342
      %v369 = vpack.c.b16 %v345, %v344
      %v370 = vpack.c.b16 %v347, %v346
      %v371 = vpack.c.b16 %v349, %v348
      %v372 = vpack.c.b16 %v351, %v350
      %v373 = vpack.c.b16 %v353, %v352
      %v374 = vpack.c.b16 %v355, %v354
      %v375 = vpack.c.b16 %v357, %v356
      %v376 = vpack.c.b16 %v359, %v358
      %v377 = vpack.c.b16 %v361, %v360
      %394 = vmatprep.subr.bf16.mxu0 0
      %395 = vmatpush1.bf16.msra.mxu0 %v369
      %396 = vmatprep.subr.bf16.mxu0 0
      %397 = vmatpush1.bf16.msra.mxu0 %v368
      %398 = vmatprep.subr.bf16.mxu0 0
      %399 = vmatpush1.bf16.msra.mxu0 %v367
      %400 = vmatprep.subr.bf16.mxu0 0
      %401 = vmatpush1.bf16.msra.mxu0 %v366
      %402 = vmatprep.subr.bf16.mxu0 0
      %403 = vmatpush1.bf16.msra.mxu0 %v365
      %404 = vmatprep.subr.bf16.mxu0 0
      %405 = vmatpush1.bf16.msra.mxu0 %v364
      %406 = vmatprep.subr.bf16.mxu0 0
      %407 = vmatpush1.bf16.msra.mxu0 %v363
      %408 = vmatprep.subr.bf16.mxu0 0
      %409 = vmatpush1.bf16.msra.mxu0 %v362
      %410 = vmatprep.subr.bf16.mxu0 0
      %411 = vmatpush2.bf16.msra.mxu0 %v377
      %412 = vmatprep.subr.bf16.mxu0 0
      %413 = vmatpush2.bf16.msra.mxu0 %v376
      %414 = vmatprep.subr.bf16.mxu0 0
      %415 = vmatpush2.bf16.msra.mxu0 %v375
      %416 = vmatprep.subr.bf16.mxu0 0
      %417 = vmatpush2.bf16.msra.mxu0 %v374
      %418 = vmatprep.subr.bf16.mxu0 0
      %419 = vmatpush2.bf16.msra.mxu0 %v373
      %420 = vmatprep.subr.bf16.mxu0 0
      %421 = vmatpush2.bf16.msra.mxu0 %v372
      %422 = vmatprep.subr.bf16.mxu0 0
      %423 = vmatpush2.bf16.msra.mxu0 %v371
      %424 = vmatprep.subr.bf16.mxu0 0
      %425 = vmatpush2.bf16.msra.mxu0 %v370
      %426 = vmatprep.mubr.bf16.mxu0 %v295
      %427 = vmatmul.mubr.bf16.gmra.mxu0 %v294
      %v428 = vpop.f32.mrf.mxu0
      %v429 = vadd.f32 0.0, %v428
      %v430 = vpop.f32.mrf.mxu0
      %v431 = vpop.f32.mrf.mxu0
      %v432 = vpop.f32.mrf.mxu0
      %433 = vdwg.mxu0
      %434 = vst.msk [vmem:[%s234] sm:$0xff] %vm257, %v429
      %v435 = vld [vmem:[%s234 + $0x1] sm:$0xff]
      %v436 = vld [vmem:[%s2] sm:$0xf]
      %v437 = vld [vmem:[%s2 + $0x4] sm:$0xf]
      %v438 = vld [vmem:[%s2 + $0x8] sm:$0xf]
      %v439 = vld [vmem:[%s2 + $0xc] sm:$0xf]
      %v440 = vld [vmem:[%s2 + $0x10] sm:$0xf]
      %v441 = vld [vmem:[%s2 + $0x14] sm:$0xf]
      %v442 = vld [vmem:[%s2 + $0x18] sm:$0xf]
      %v443 = vld [vmem:[%s2 + $0x1c] sm:$0xf]
      %v444 = vld [vmem:[%s2 + $0x20] sm:$0xf]
      %v445 = vld [vmem:[%s2 + $0x24] sm:$0xf]
      %v446 = vld [vmem:[%s2 + $0x28] sm:$0xf]
      %v447 = vld [vmem:[%s2 + $0x2c] sm:$0xf]
      %v448 = vld [vmem:[%s2 + $0x30] sm:$0xf]
      %v449 = vld [vmem:[%s2 + $0x34] sm:$0xf]
      %v450 = vld [vmem:[%s2 + $0x38] sm:$0xf]
      %v451 = vld [vmem:[%s2 + $0x3c] sm:$0xf]
      %v452 = vld [vmem:[%s2 + $0x40] sm:$0xf]
      %v453 = vld [vmem:[%s2 + $0x44] sm:$0xf]
      %v454 = vld [vmem:[%s2 + $0x48] sm:$0xf]
      %v455 = vld [vmem:[%s2 + $0x4c] sm:$0xf]
      %v456 = vld [vmem:[%s2 + $0x50] sm:$0xf]
      %v457 = vld [vmem:[%s2 + $0x54] sm:$0xf]
      %v458 = vld [vmem:[%s2 + $0x58] sm:$0xf]
      %v459 = vld [vmem:[%s2 + $0x5c] sm:$0xf]
      %v460 = vld [vmem:[%s2 + $0x60] sm:$0xf]
      %v461 = vld [vmem:[%s2 + $0x64] sm:$0xf]
      %v462 = vld [vmem:[%s2 + $0x68] sm:$0xf]
      %v463 = vld [vmem:[%s2 + $0x6c] sm:$0xf]
      %v464 = vld [vmem:[%s2 + $0x70] sm:$0xf]
      %v465 = vld [vmem:[%s2 + $0x74] sm:$0xf]
      %v466 = vld [vmem:[%s2 + $0x78] sm:$0xf]
      %v467 = vld [vmem:[%s2 + $0x7c] sm:$0xf]
      %v500 = vunpack.c.l.b16 %v436
      %v501 = vunpack.c.l.b16 %v437
      %v502 = vunpack.c.l.b16 %v438
      %v503 = vunpack.c.l.b16 %v439
      %v504 = vunpack.c.l.b16 %v440
      %v505 = vunpack.c.l.b16 %v441
      %v506 = vunpack.c.l.b16 %v442
      %v507 = vunpack.c.l.b16 %v443
      %v508 = vunpack.c.l.b16 %v444
      %v509 = vunpack.c.l.b16 %v445
      %v510 = vunpack.c.l.b16 %v446
      %v511 = vunpack.c.l.b16 %v447
      %v512 = vunpack.c.l.b16 %v448
      %v513 = vunpack.c.l.b16 %v449
      %v514 = vunpack.c.l.b16 %v450
      %v515 = vunpack.c.l.b16 %v451
      %v516 = vunpack.c.l.b16 %v452
      %v517 = vunpack.c.l.b16 %v453
      %v518 = vunpack.c.l.b16 %v454
      %v519 = vunpack.c.l.b16 %v455
      %v520 = vunpack.c.l.b16 %v456
      %v521 = vunpack.c.l.b16 %v457
      %v522 = vunpack.c.l.b16 %v458
      %v523 = vunpack.c.l.b16 %v459
      %v524 = vunpack.c.l.b16 %v460
      %v525 = vunpack.c.l.b16 %v461
      %v526 = vunpack.c.l.b16 %v462
      %v527 = vunpack.c.l.b16 %v463
      %v528 = vunpack.c.l.b16 %v464
      %v529 = vunpack.c.l.b16 %v465
      %v530 = vunpack.c.l.b16 %v466
      %v531 = vunpack.c.l.b16 %v467
      %v532 = vpack.c.b16 %v501, %v500
      %v533 = vpack.c.b16 %v503, %v502
      %v534 = vpack.c.b16 %v505, %v504
      %v535 = vpack.c.b16 %v507, %v506
      %v536 = vpack.c.b16 %v509, %v508
      %v537 = vpack.c.b16 %v511, %v510
      %v538 = vpack.c.b16 %v513, %v512
      %v539 = vpack.c.b16 %v515, %v514
      %v540 = vpack.c.b16 %v517, %v516
      %v541 = vpack.c.b16 %v519, %v518
      %v542 = vpack.c.b16 %v521, %v520
      %v543 = vpack.c.b16 %v523, %v522
      %v544 = vpack.c.b16 %v525, %v524
      %v545 = vpack.c.b16 %v527, %v526
      %v546 = vpack.c.b16 %v529, %v528
      %v547 = vpack.c.b16 %v531, %v530
      %548 = vrot.lane.b32.xlu0 %v532, 124
      %v549 = vpop.permute.xlu0 %548
      %550 = vrot.lane.b32.xlu0 %v533, 124
      %v551 = vpop.permute.xlu0 %550
      %552 = vrot.lane.b32.xlu0 %v534, 124
      %v553 = vpop.permute.xlu0 %552
      %554 = vrot.lane.b32.xlu0 %v535, 124
      %v555 = vpop.permute.xlu0 %554
      %556 = vrot.lane.b32.xlu0 %v536, 124
      %v557 = vpop.permute.xlu0 %556
      %558 = vrot.lane.b32.xlu0 %v537, 124
      %v559 = vpop.permute.xlu0 %558
      %560 = vrot.lane.b32.xlu0 %v538, 124
      %v561 = vpop.permute.xlu0 %560
      %562 = vrot.lane.b32.xlu0 %v539, 124
      %v563 = vpop.permute.xlu0 %562
      %564 = vrot.lane.b32.xlu0 %v540, 124
      %v565 = vpop.permute.xlu0 %564
      %566 = vrot.lane.b32.xlu0 %v541, 124
      %v567 = vpop.permute.xlu0 %566
      %568 = vrot.lane.b32.xlu0 %v542, 124
      %v569 = vpop.permute.xlu0 %568
      %570 = vrot.lane.b32.xlu0 %v543, 124
      %v571 = vpop.permute.xlu0 %570
      %572 = vrot.lane.b32.xlu0 %v544, 124
      %v573 = vpop.permute.xlu0 %572
      %574 = vrot.lane.b32.xlu0 %v545, 124
      %v575 = vpop.permute.xlu0 %574
      %576 = vrot.lane.b32.xlu0 %v546, 124
      %v577 = vpop.permute.xlu0 %576
      %578 = vrot.lane.b32.xlu0 %v547, 124
      %v579 = vpop.permute.xlu0 %578
      %596 = vmatprep.subr.bf16.mxu0 0
      %597 = vmatpush1.bf16.msra.mxu0 %v563
      %598 = vmatprep.subr.bf16.mxu0 0
      %599 = vmatpush1.bf16.msra.mxu0 %v561
      %600 = vmatprep.subr.bf16.mxu0 0
      %601 = vmatpush1.bf16.msra.mxu0 %v559
      %602 = vmatprep.subr.bf16.mxu0 0
      %603 = vmatpush1.bf16.msra.mxu0 %v557
      %604 = vmatprep.subr.bf16.mxu0 0
      %605 = vmatpush1.bf16.msra.mxu0 %v555
      %606 = vmatprep.subr.bf16.mxu0 0
      %607 = vmatpush1.bf16.msra.mxu0 %v553
      %608 = vmatprep.subr.bf16.mxu0 0
      %609 = vmatpush1.bf16.msra.mxu0 %v551
      %610 = vmatprep.subr.bf16.mxu0 0
      %611 = vmatpush1.bf16.msra.mxu0 %v549
      %612 = vmatprep.subr.bf16.mxu0 0
      %613 = vmatpush2.bf16.msra.mxu0 %v579
      %614 = vmatprep.subr.bf16.mxu0 0
      %615 = vmatpush2.bf16.msra.mxu0 %v577
      %616 = vmatprep.subr.bf16.mxu0 0
      %617 = vmatpush2.bf16.msra.mxu0 %v575
      %618 = vmatprep.subr.bf16.mxu0 0
      %619 = vmatpush2.bf16.msra.mxu0 %v573
      %620 = vmatprep.subr.bf16.mxu0 0
      %621 = vmatpush2.bf16.msra.mxu0 %v571
      %622 = vmatprep.subr.bf16.mxu0 0
      %623 = vmatpush2.bf16.msra.mxu0 %v569
      %624 = vmatprep.subr.bf16.mxu0 0
      %625 = vmatpush2.bf16.msra.mxu0 %v567
      %626 = vmatprep.subr.bf16.mxu0 0
      %627 = vmatpush2.bf16.msra.mxu0 %v565
      %628 = vmatprep.mubr.bf16.mxu0 %v295
      %629 = vmatmul.mubr.bf16.gmra.mxu0 %v294
      %v630 = vpop.f32.mrf.mxu0
      %v631 = vadd.f32 0.0, %v630
      %v632 = vpop.f32.mrf.mxu0
      %v633 = vpop.f32.mrf.mxu0
      %v634 = vpop.f32.mrf.mxu0
      %635 = vdwg.mxu0
      %v636 = vadd.f32 %v435, %v631
      %637 = vst.msk [vmem:[%s234 + $0x1] sm:$0xff] %vm257, %v636
      %v638 = vld [vmem:[%s234 + $0x2] sm:$0xff]
      %v639 = vld [vmem:[%s2] sm:$0xf]
      %v640 = vld [vmem:[%s2 + $0x4] sm:$0xf]
      %v641 = vld [vmem:[%s2 + $0x8] sm:$0xf]
      %v642 = vld [vmem:[%s2 + $0xc] sm:$0xf]
      %v643 = vld [vmem:[%s2 + $0x10] sm:$0xf]
      %v644 = vld [vmem:[%s2 + $0x14] sm:$0xf]
      %v645 = vld [vmem:[%s2 + $0x18] sm:$0xf]
      %v646 = vld [vmem:[%s2 + $0x1c] sm:$0xf]
      %v647 = vld [vmem:[%s2 + $0x20] sm:$0xf]
      %v648 = vld [vmem:[%s2 + $0x24] sm:$0xf]
      %v649 = vld [vmem:[%s2 + $0x28] sm:$0xf]
      %v650 = vld [vmem:[%s2 + $0x2c] sm:$0xf]
      %v651 = vld [vmem:[%s2 + $0x30] sm:$0xf]
      %v652 = vld [vmem:[%s2 + $0x34] sm:$0xf]
      %v653 = vld [vmem:[%s2 + $0x38] sm:$0xf]
      %v654 = vld [vmem:[%s2 + $0x3c] sm:$0xf]
      %v655 = vld [vmem:[%s2 + $0x40] sm:$0xf]
      %v656 = vld [vmem:[%s2 + $0x44] sm:$0xf]
      %v657 = vld [vmem:[%s2 + $0x48] sm:$0xf]
      %v658 = vld [vmem:[%s2 + $0x4c] sm:$0xf]
      %v659 = vld [vmem:[%s2 + $0x50] sm:$0xf]
      %v660 = vld [vmem:[%s2 + $0x54] sm:$0xf]
      %v661 = vld [vmem:[%s2 + $0x58] sm:$0xf]
      %v662 = vld [vmem:[%s2 + $0x5c] sm:$0xf]
      %v663 = vld [vmem:[%s2 + $0x60] sm:$0xf]
      %v664 = vld [vmem:[%s2 + $0x64] sm:$0xf]
      %v665 = vld [vmem:[%s2 + $0x68] sm:$0xf]
      %v666 = vld [vmem:[%s2 + $0x6c] sm:$0xf]
      %v667 = vld [vmem:[%s2 + $0x70] sm:$0xf]
      %v668 = vld [vmem:[%s2 + $0x74] sm:$0xf]
      %v669 = vld [vmem:[%s2 + $0x78] sm:$0xf]
      %v670 = vld [vmem:[%s2 + $0x7c] sm:$0xf]
      %v703 = vunpack.c.l.b16 %v639
      %v704 = vunpack.c.l.b16 %v640
      %v705 = vunpack.c.l.b16 %v641
      %v706 = vunpack.c.l.b16 %v642
      %v707 = vunpack.c.l.b16 %v643
      %v708 = vunpack.c.l.b16 %v644
      %v709 = vunpack.c.l.b16 %v645
      %v710 = vunpack.c.l.b16 %v646
      %v711 = vunpack.c.l.b16 %v647
      %v712 = vunpack.c.l.b16 %v648
      %v713 = vunpack.c.l.b16 %v649
      %v714 = vunpack.c.l.b16 %v650
      %v715 = vunpack.c.l.b16 %v651
      %v716 = vunpack.c.l.b16 %v652
      %v717 = vunpack.c.l.b16 %v653
      %v718 = vunpack.c.l.b16 %v654
      %v719 = vunpack.c.l.b16 %v655
      %v720 = vunpack.c.l.b16 %v656
      %v721 = vunpack.c.l.b16 %v657
      %v722 = vunpack.c.l.b16 %v658
      %v723 = vunpack.c.l.b16 %v659
      %v724 = vunpack.c.l.b16 %v660
      %v725 = vunpack.c.l.b16 %v661
      %v726 = vunpack.c.l.b16 %v662
      %v727 = vunpack.c.l.b16 %v663
      %v728 = vunpack.c.l.b16 %v664
      %v729 = vunpack.c.l.b16 %v665
      %v730 = vunpack.c.l.b16 %v666
      %v731 = vunpack.c.l.b16 %v667
      %v732 = vunpack.c.l.b16 %v668
      %v733 = vunpack.c.l.b16 %v669
      %v734 = vunpack.c.l.b16 %v670
      %v735 = vpack.c.b16 %v704, %v703
      %v736 = vpack.c.b16 %v706, %v705
      %v737 = vpack.c.b16 %v708, %v707
      %v738 = vpack.c.b16 %v710, %v709
      %v739 = vpack.c.b16 %v712, %v711
      %v740 = vpack.c.b16 %v714, %v713
      %v741 = vpack.c.b16 %v716, %v715
      %v742 = vpack.c.b16 %v718, %v717
      %v743 = vpack.c.b16 %v720, %v719
      %v744 = vpack.c.b16 %v722, %v721
      %v745 = vpack.c.b16 %v724, %v723
      %v746 = vpack.c.b16 %v726, %v725
      %v747 = vpack.c.b16 %v728, %v727
      %v748 = vpack.c.b16 %v730, %v729
      %v749 = vpack.c.b16 %v732, %v731
      %v750 = vpack.c.b16 %v734, %v733
      %751 = vrot.lane.b32.xlu0 %v735, 120
      %v752 = vpop.permute.xlu0 %751
      %753 = vrot.lane.b32.xlu0 %v736, 120
      %v754 = vpop.permute.xlu0 %753
      %755 = vrot.lane.b32.xlu0 %v737, 120
      %v756 = vpop.permute.xlu0 %755
      %757 = vrot.lane.b32.xlu0 %v738, 120
      %v758 = vpop.permute.xlu0 %757
      %759 = vrot.lane.b32.xlu0 %v739, 120
      %v760 = vpop.permute.xlu0 %759
      %761 = vrot.lane.b32.xlu0 %v740, 120
      %v762 = vpop.permute.xlu0 %761
      %763 = vrot.lane.b32.xlu0 %v741, 120
      %v764 = vpop.permute.xlu0 %763
      %765 = vrot.lane.b32.xlu0 %v742, 120
      %v766 = vpop.permute.xlu0 %765
      %767 = vrot.lane.b32.xlu0 %v743, 120
      %v768 = vpop.permute.xlu0 %767
      %769 = vrot.lane.b32.xlu0 %v744, 120
      %v770 = vpop.permute.xlu0 %769
      %771 = vrot.lane.b32.xlu0 %v745, 120
      %v772 = vpop.permute.xlu0 %771
      %773 = vrot.lane.b32.xlu0 %v746, 120
      %v774 = vpop.permute.xlu0 %773
      %775 = vrot.lane.b32.xlu0 %v747, 120
      %v776 = vpop.permute.xlu0 %775
      %777 = vrot.lane.b32.xlu0 %v748, 120
      %v778 = vpop.permute.xlu0 %777
      %779 = vrot.lane.b32.xlu0 %v749, 120
      %v780 = vpop.permute.xlu0 %779
      %781 = vrot.lane.b32.xlu0 %v750, 120
      %v782 = vpop.permute.xlu0 %781
      %799 = vmatprep.subr.bf16.mxu0 0
      %800 = vmatpush1.bf16.msra.mxu0 %v766
      %801 = vmatprep.subr.bf16.mxu0 0
      %802 = vmatpush1.bf16.msra.mxu0 %v764
      %803 = vmatprep.subr.bf16.mxu0 0
      %804 = vmatpush1.bf16.msra.mxu0 %v762
      %805 = vmatprep.subr.bf16.mxu0 0
      %806 = vmatpush1.bf16.msra.mxu0 %v760
      %807 = vmatprep.subr.bf16.mxu0 0
      %808 = vmatpush1.bf16.msra.mxu0 %v758
      %809 = vmatprep.subr.bf16.mxu0 0
      %810 = vmatpush1.bf16.msra.mxu0 %v756
      %811 = vmatprep.subr.bf16.mxu0 0
      %812 = vmatpush1.bf16.msra.mxu0 %v754
      %813 = vmatprep.subr.bf16.mxu0 0
      %814 = vmatpush1.bf16.msra.mxu0 %v752
      %815 = vmatprep.subr.bf16.mxu0 0
      %816 = vmatpush2.bf16.msra.mxu0 %v782
      %817 = vmatprep.subr.bf16.mxu0 0
      %818 = vmatpush2.bf16.msra.mxu0 %v780
      %819 = vmatprep.subr.bf16.mxu0 0
      %820 = vmatpush2.bf16.msra.mxu0 %v778
      %821 = vmatprep.subr.bf16.mxu0 0
      %822 = vmatpush2.bf16.msra.mxu0 %v776
      %823 = vmatprep.subr.bf16.mxu0 0
      %824 = vmatpush2.bf16.msra.mxu0 %v774
      %825 = vmatprep.subr.bf16.mxu0 0
      %826 = vmatpush2.bf16.msra.mxu0 %v772
      %827 = vmatprep.subr.bf16.mxu0 0
      %828 = vmatpush2.bf16.msra.mxu0 %v770
      %829 = vmatprep.subr.bf16.mxu0 0
      %830 = vmatpush2.bf16.msra.mxu0 %v768
      %831 = vmatprep.mubr.bf16.mxu0 %v295
      %832 = vmatmul.mubr.bf16.gmra.mxu0 %v294
      %v833 = vpop.f32.mrf.mxu0
      %v834 = vadd.f32 0.0, %v833
      %v835 = vpop.f32.mrf.mxu0
      %v836 = vpop.f32.mrf.mxu0
      %v837 = vpop.f32.mrf.mxu0
      %838 = vdwg.mxu0
      %v839 = vadd.f32 %v638, %v834
      %840 = vst.msk [vmem:[%s234 + $0x2] sm:$0xff] %vm257, %v839
      %v841 = vld [vmem:[%s234 + $0x3] sm:$0xff]
      %v842 = vld [vmem:[%s2] sm:$0xf]
      %v843 = vld [vmem:[%s2 + $0x4] sm:$0xf]
      %v844 = vld [vmem:[%s2 + $0x8] sm:$0xf]
      %v845 = vld [vmem:[%s2 + $0xc] sm:$0xf]
      %v846 = vld [vmem:[%s2 + $0x10] sm:$0xf]
      %v847 = vld [vmem:[%s2 + $0x14] sm:$0xf]
      %v848 = vld [vmem:[%s2 + $0x18] sm:$0xf]
      %v849 = vld [vmem:[%s2 + $0x1c] sm:$0xf]
      %v850 = vld [vmem:[%s2 + $0x20] sm:$0xf]
      %v851 = vld [vmem:[%s2 + $0x24] sm:$0xf]
      %v852 = vld [vmem:[%s2 + $0x28] sm:$0xf]
      %v853 = vld [vmem:[%s2 + $0x2c] sm:$0xf]
      %v854 = vld [vmem:[%s2 + $0x30] sm:$0xf]
      %v855 = vld [vmem:[%s2 + $0x34] sm:$0xf]
      %v856 = vld [vmem:[%s2 + $0x38] sm:$0xf]
      %v857 = vld [vmem:[%s2 + $0x3c] sm:$0xf]
      %v858 = vld [vmem:[%s2 + $0x40] sm:$0xf]
      %v859 = vld [vmem:[%s2 + $0x44] sm:$0xf]
      %v860 = vld [vmem:[%s2 + $0x48] sm:$0xf]
      %v861 = vld [vmem:[%s2 + $0x4c] sm:$0xf]
      %v862 = vld [vmem:[%s2 + $0x50] sm:$0xf]
      %v863 = vld [vmem:[%s2 + $0x54] sm:$0xf]
      %v864 = vld [vmem:[%s2 + $0x58] sm:$0xf]
      %v865 = vld [vmem:[%s2 + $0x5c] sm:$0xf]
      %v866 = vld [vmem:[%s2 + $0x60] sm:$0xf]
      %v867 = vld [vmem:[%s2 + $0x64] sm:$0xf]
      %v868 = vld [vmem:[%s2 + $0x68] sm:$0xf]
      %v869 = vld [vmem:[%s2 + $0x6c] sm:$0xf]
      %v870 = vld [vmem:[%s2 + $0x70] sm:$0xf]
      %v871 = vld [vmem:[%s2 + $0x74] sm:$0xf]
      %v872 = vld [vmem:[%s2 + $0x78] sm:$0xf]
      %v873 = vld [vmem:[%s2 + $0x7c] sm:$0xf]
      %v906 = vunpack.c.l.b16 %v842
      %v907 = vunpack.c.l.b16 %v843
      %v908 = vunpack.c.l.b16 %v844
      %v909 = vunpack.c.l.b16 %v845
      %v910 = vunpack.c.l.b16 %v846
      %v911 = vunpack.c.l.b16 %v847
      %v912 = vunpack.c.l.b16 %v848
      %v913 = vunpack.c.l.b16 %v849
      %v914 = vunpack.c.l.b16 %v850
      %v915 = vunpack.c.l.b16 %v851
      %v916 = vunpack.c.l.b16 %v852
      %v917 = vunpack.c.l.b16 %v853
      %v918 = vunpack.c.l.b16 %v854
      %v919 = vunpack.c.l.b16 %v855
      %v920 = vunpack.c.l.b16 %v856
      %v921 = vunpack.c.l.b16 %v857
      %v922 = vunpack.c.l.b16 %v858
      %v923 = vunpack.c.l.b16 %v859
      %v924 = vunpack.c.l.b16 %v860
      %v925 = vunpack.c.l.b16 %v861
      %v926 = vunpack.c.l.b16 %v862
      %v927 = vunpack.c.l.b16 %v863
      %v928 = vunpack.c.l.b16 %v864
      %v929 = vunpack.c.l.b16 %v865
      %v930 = vunpack.c.l.b16 %v866
      %v931 = vunpack.c.l.b16 %v867
      %v932 = vunpack.c.l.b16 %v868
      %v933 = vunpack.c.l.b16 %v869
      %v934 = vunpack.c.l.b16 %v870
      %v935 = vunpack.c.l.b16 %v871
      %v936 = vunpack.c.l.b16 %v872
      %v937 = vunpack.c.l.b16 %v873
      %v938 = vpack.c.b16 %v907, %v906
      %v939 = vpack.c.b16 %v909, %v908
      %v940 = vpack.c.b16 %v911, %v910
      %v941 = vpack.c.b16 %v913, %v912
      %v942 = vpack.c.b16 %v915, %v914
      %v943 = vpack.c.b16 %v917, %v916
      %v944 = vpack.c.b16 %v919, %v918
      %v945 = vpack.c.b16 %v921, %v920
      %v946 = vpack.c.b16 %v923, %v922
      %v947 = vpack.c.b16 %v925, %v924
      %v948 = vpack.c.b16 %v927, %v926
      %v949 = vpack.c.b16 %v929, %v928
      %v950 = vpack.c.b16 %v931, %v930
      %v951 = vpack.c.b16 %v933, %v932
      %v952 = vpack.c.b16 %v935, %v934
      %v953 = vpack.c.b16 %v937, %v936
      %954 = vrot.lane.b32.xlu0 %v938, 116
      %v955 = vpop.permute.xlu0 %954
      %956 = vrot.lane.b32.xlu0 %v939, 116
      %v957 = vpop.permute.xlu0 %956
      %958 = vrot.lane.b32.xlu0 %v940, 116
      %v959 = vpop.permute.xlu0 %958
      %960 = vrot.lane.b32.xlu0 %v941, 116
      %v961 = vpop.permute.xlu0 %960
      %962 = vrot.lane.b32.xlu0 %v942, 116
      %v963 = vpop.permute.xlu0 %962
      %964 = vrot.lane.b32.xlu0 %v943, 116
      %v965 = vpop.permute.xlu0 %964
      %966 = vrot.lane.b32.xlu0 %v944, 116
      %v967 = vpop.permute.xlu0 %966
      %968 = vrot.lane.b32.xlu0 %v945, 116
      %v969 = vpop.permute.xlu0 %968
      %970 = vrot.lane.b32.xlu0 %v946, 116
      %v971 = vpop.permute.xlu0 %970
      %972 = vrot.lane.b32.xlu0 %v947, 116
      %v973 = vpop.permute.xlu0 %972
      %974 = vrot.lane.b32.xlu0 %v948, 116
      %v975 = vpop.permute.xlu0 %974
      %976 = vrot.lane.b32.xlu0 %v949, 116
      %v977 = vpop.permute.xlu0 %976
      %978 = vrot.lane.b32.xlu0 %v950, 116
      %v979 = vpop.permute.xlu0 %978
      %980 = vrot.lane.b32.xlu0 %v951, 116
      %v981 = vpop.permute.xlu0 %980
      %982 = vrot.lane.b32.xlu0 %v952, 116
      %v983 = vpop.permute.xlu0 %982
      %984 = vrot.lane.b32.xlu0 %v953, 116
      %v985 = vpop.permute.xlu0 %984
      %1002 = vmatprep.subr.bf16.mxu0 0
      %1003 = vmatpush1.bf16.msra.mxu0 %v969
      %1004 = vmatprep.subr.bf16.mxu0 0
      %1005 = vmatpush1.bf16.msra.mxu0 %v967
      %1006 = vmatprep.subr.bf16.mxu0 0
      %1007 = vmatpush1.bf16.msra.mxu0 %v965
      %1008 = vmatprep.subr.bf16.mxu0 0
      %1009 = vmatpush1.bf16.msra.mxu0 %v963
      %1010 = vmatprep.subr.bf16.mxu0 0
      %1011 = vmatpush1.bf16.msra.mxu0 %v961
      %1012 = vmatprep.subr.bf16.mxu0 0
      %1013 = vmatpush1.bf16.msra.mxu0 %v959
      %1014 = vmatprep.subr.bf16.mxu0 0
      %1015 = vmatpush1.bf16.msra.mxu0 %v957
      %1016 = vmatprep.subr.bf16.mxu0 0
      %1017 = vmatpush1.bf16.msra.mxu0 %v955
      %1018 = vmatprep.subr.bf16.mxu0 0
      %1019 = vmatpush2.bf16.msra.mxu0 %v985
      %1020 = vmatprep.subr.bf16.mxu0 0
      %1021 = vmatpush2.bf16.msra.mxu0 %v983
      %1022 = vmatprep.subr.bf16.mxu0 0
      %1023 = vmatpush2.bf16.msra.mxu0 %v981
      %1024 = vmatprep.subr.bf16.mxu0 0
      %1025 = vmatpush2.bf16.msra.mxu0 %v979
      %1026 = vmatprep.subr.bf16.mxu0 0
      %1027 = vmatpush2.bf16.msra.mxu0 %v977
      %1028 = vmatprep.subr.bf16.mxu0 0
      %1029 = vmatpush2.bf16.msra.mxu0 %v975
      %1030 = vmatprep.subr.bf16.mxu0 0
      %1031 = vmatpush2.bf16.msra.mxu0 %v973
      %1032 = vmatprep.subr.bf16.mxu0 0
      %1033 = vmatpush2.bf16.msra.mxu0 %v971
      %1034 = vmatprep.mubr.bf16.mxu0 %v295
      %1035 = vmatmul.mubr.bf16.gmra.mxu0 %v294
      %v1036 = vpop.f32.mrf.mxu0
      %v1037 = vadd.f32 0.0, %v1036
      %v1038 = vpop.f32.mrf.mxu0
      %v1039 = vpop.f32.mrf.mxu0
      %v1040 = vpop.f32.mrf.mxu0
      %1041 = vdwg.mxu0
      %v1042 = vadd.f32 %v841, %v1037
      %1043 = vst.msk [vmem:[%s234 + $0x3] sm:$0xff] %vm257, %v1042
      %p1044 = scmp.lt.s32.totalorder %s18, 1
      %s1045 = scalar_select %p1044, %s18, 1
      %p1046 = scmp.lt.s32.totalorder %s19, 0
      %s1047 = scalar_select %p1046, %s19, 0
      %s1048 = smul.addr %s1047, 2
      %s1049 = smul.addr %s1045, 2
      %s1050 = sadd.s32 %s1048, %s1049
      %s1051 = smul.addr %s1050, 8
      %s1052 = scalar_lea.vmem %s3, %s1051
      // Predicated region
      $region33: #{closed_call.13} parent=31 // pred_check
        %p1053 = pneg %p123
      $region34: #{closed_call.13} parent=31 // pred_check_branch
        %1055 = sbr.rel (%p1053) target = $region36
      $region35: #{closed_call.13} parent=31 // pred_region
        _
      $region36: #{closed_call.13} parent=31 // pred_fallthru
        _
    $region32: #{closed_call.13} parent=5 // pred_fallthru
      _
    %p1056 = scmp.le.s32.totalorder 2, %s9
    // Predicated region
    $region37: #{closed_call.13} parent=5 // pred_check
      %p1057 = pneg %p1056
    $region38: #{closed_call.13} parent=5 // pred_check_branch
      %1059 = sbr.rel (%p1057) target = $region40
    $region39: #{closed_call.13} parent=5 // pred_region
      %s1060 = ssub.s32 %s9, 2
      // Predicated region
      $region41: #{closed_call.13} parent=39 // pred_check
        %p1061 = pneg %p129
      $region42: #{closed_call.13} parent=39 // pred_check_branch
        %1063 = sbr.rel (%p1061) target = $region44
      $region43: #{closed_call.13} parent=39 // pred_region
        %p1064 = scmp.lt.s32.totalorder %s20, 1
        %s1065 = scalar_select %p1064, %s20, 1
        %p1066 = scmp.lt.s32.totalorder %s21, 0
        %s1067 = scalar_select %p1066, %s21, 0
        %s1068 = smul.addr %s1067, 2
        %s1069 = smul.addr %s1065, 2
        %s1070 = sadd.s32 %s1068, %s1069
        %s1071 = smul.addr %s1070, 8
        %s1072 = scalar_lea.vmem %s3, %s1071
      $region44: #{closed_call.13} parent=39 // pred_fallthru
        _
    $region40: #{closed_call.13} parent=5 // pred_fallthru
      _
  $region6: #{closed_call.13} parent=0 // loop_footer
    %s13 = sadd.s32 1, %s9
  $region7: #{closed_call.13} parent=0 // loop_footer_branch
    %8 = sbr.rel target = $region3
  $region8: #{closed_call.13} parent=0 // loop_exit
    _

</llo_original>
